<compile_context>
chip_gen: v6e
topology: v6e:2x2x1
jax: 0.10.0
libtpu: 0.0.40
codegen_flags: <defaults>
</compile_context>

<pallas_src>
import numpy as np
import jax
import jax.numpy as jnp
from jax import lax
from jax.experimental import pallas as pl
from jax.experimental.pallas import tpu as pltpu

H = 7
W = 7
P = H * W          # 49 spatial positions (module hardcodes 7x7)
EPS = 1e-5


# ----------------------------------------------------------------------------
# Kernel: the entire network on one (TB, Cin*49) batch tile.
# ----------------------------------------------------------------------------
def mrc_kernel(x_ref, w1_ref, b1_ref, w2_ref, b2_ref, out_ref):
    # x_ref  : (TB, Cin*49)   NCHW-flattened batch tile
    # w1_ref : (Cin*49, 15*49)  folded conv1*BN1 (block-diagonal over spatial)
    # b1_ref : (1, 15*49)
    # w2_ref : (3, 15*49, 5*49) folded branch convs (pad/crop/scatter baked in)
    # b2_ref : (3, 1, 5*49)
    # out_ref: (TB, 5*49)
    x = x_ref[...]
    ori = jnp.dot(x, w1_ref[...], preferred_element_type=jnp.float32)
    ori = jnp.maximum(ori + b1_ref[...], 0.0)                  # (TB, 735)

    out = jnp.zeros(out_ref.shape, jnp.float32)
    for k in range(3):                                         # 3 branches, static unroll
        pre = jnp.dot(ori, w2_ref[k], preferred_element_type=jnp.float32)
        out = out + jnp.maximum(pre + b2_ref[k], 0.0)
    out_ref[...] = out                                         # single contiguous store


# ----------------------------------------------------------------------------
# Wrapper
# ----------------------------------------------------------------------------
def _batch_tiling(batch):
    """Pick batch tile TB and padded batch Bp.

    VMEM per step: TB*(49*Cin + 245)*4 B (double-buffered) + ~3 MB of folded
    weights -> TB capped at 256 fits easily on v5e/v6e (128 MiB) and v7x
    (64 MiB). Keep >=2 grid steps when the batch allows it (v7x: 2 TCs).
    """
    if batch < 16:
        return batch, batch                      # one block equal to full dim
    if batch >= 512:
        tb = 256
    else:
        tb = ((-(-batch // 2)) + 7) // 8 * 8     # ~batch/2, sublane-aligned
    bp = -(-batch // tb) * tb
    return tb, bp


@jax.jit
def mrc_forward(x_nchw, kp):
    B, Cin, Hh, Ww = x_nchw.shape
    assert (Hh, Ww) == (H, W), "MRC forward requires 7x7 spatial input"
    # NCHW -> (B, Cin*49): pure reshape, no transpose / HBM shuffle.
    x_flat = x_nchw.reshape(B, Cin * P)

    tb, bp = _batch_tiling(B)
    if bp != B:
        x_flat = jnp.pad(x_flat, ((0, bp - B), (0, 0)))
    grid = (bp // tb,)

    out = pl.pallas_call(
        mrc_kernel,
        out_shape=jax.ShapeDtypeStruct((bp, 5 * P), jnp.float32),
        grid_spec=pltpu.PrefetchScalarGridSpec(
            num_scalar_prefetch=0,
            grid=grid,
            in_specs=[
                pl.BlockSpec((tb, Cin * P), lambda b: (b, 0)),
                pl.BlockSpec((Cin * P, 15 * P), lambda b: (0, 0)),
                pl.BlockSpec((1, 15 * P), lambda b: (0, 0)),
                pl.BlockSpec((3, 15 * P, 5 * P), lambda b: (0, 0, 0)),
                pl.BlockSpec((3, 1, 5 * P), lambda b: (0, 0, 0)),
            ],
            out_specs=pl.BlockSpec((tb, 5 * P), lambda b: (b, 0)),
        ),
        compiler_params=pltpu.CompilerParams(
            dimension_semantics=("parallel",)),
    )(x_flat, kp["w1"], kp["b1"], kp["w2"], kp["b2"])

    out = out[:B]
    # (B, 5*49) is already NCHW channel-major -> free reshape.
    return out.reshape(B, 5, H, W)


# ----------------------------------------------------------------------------
# Parameter folding: bake conv structure + padding + crop/scatter + BN into
# dense operand matrices (one-time host/JAX setup, outside the kernel).
# ----------------------------------------------------------------------------
def _branch_structural(kind):
    """S[q, dh, dw, p] = 1 if ori spatial position q feeds output spatial
    position p through 3x3 tap (dh, dw) for the given branch."""
    S = np.zeros((P, 3, 3, P), np.float32)
    for ph in range(H):
        for pw in range(W):
            if kind == "h" and ph not in (2, 3, 4):
                continue
            if kind == "v" and pw not in (2, 3, 4):
                continue
            p = ph * W + pw
            for dh in range(3):
                for dw in range(3):
                    if kind == "sq":                     # 7x7 same-conv
                        ih, iw = ph + dh - 1, pw + dw - 1
                        ok = (0 <= ih < H) and (0 <= iw < W)
                    elif kind == "h":                    # rows 2:5, 3x7 same-conv
                        lih, liw = (ph - 2) + dh - 1, pw + dw - 1
                        ok = (0 <= lih < 3) and (0 <= liw < W)
                        ih, iw = 2 + lih, liw
                    else:                                # cols 2:5, 7x3 same-conv
                        lih, liw = ph + dh - 1, (pw - 2) + dw - 1
                        ok = (0 <= lih < H) and (0 <= liw < 3)
                        ih, iw = lih, 2 + liw
                    if ok:
                        S[ih * W + iw, dh, dw, p] = 1.0
    return S


def fold_params(p, cin):
    """Fold BN (inference) + biases + conv structure into matmul operands."""
    # conv1 (no bias) + bn1
    s1 = p["bn1_gamma"] / jnp.sqrt(p["bn1_var"] + EPS)             # (15,)
    b1 = p["bn1_beta"] - s1 * p["bn1_mean"]                        # (15,)
    w1eff = p["conv1_w"].reshape(15, cin) * s1[:, None]            # (15, Cin)
    # Block-diagonal over spatial: [ci*49+q, co*49+p] = w1eff[co,ci] * (q==p)
    w1big = jnp.kron(w1eff.T, jnp.eye(P, dtype=jnp.float32))       # (Cin*49, 735)
    b1big = jnp.repeat(b1, P)[None, :]                             # (1, 735)

    kinds = ("sq", "h", "v")
    names = ("2_1", "2_2", "2_3")
    w2_blocks, b2_blocks = [], []
    for k, (kind, name) in enumerate(zip(kinds, names)):
        s = p[f"bn{name}_gamma"] / jnp.sqrt(p[f"bn{name}_var"] + EPS)          # (5,)
        bias = p[f"bn{name}_beta"] + s * (p[f"conv{name}_b"] - p[f"bn{name}_mean"])
        weff = p[f"conv{name}_w"] * s[:, None, None, None]                     # (5,5,3,3) OIHW
        S = jnp.asarray(_branch_structural(kind))                              # (49,3,3,49)
        # m[ci, q, co, p] = sum_{dh,dw} weff[co,ci,dh,dw] * S[q,dh,dw,p]
        m_local = jnp.einsum("oiab,qabp->iqop", weff, S).reshape(5 * P, 5 * P)
        m_full = jnp.zeros((15 * P, 5 * P), jnp.float32)
        m_full = m_full.at[k * 5 * P:(k + 1) * 5 * P, :].set(m_local)
        w2_blocks.append(m_full)

        if kind == "sq":
            mask = np.ones((P,), np.float32)
        elif kind == "h":
            mask = np.repeat(((np.arange(H) >= 2) & (np.arange(H) <= 4))
                             .astype(np.float32), W)
        else:
            mask = np.tile(((np.arange(W) >= 2) & (np.arange(W) <= 4))
                           .astype(np.float32), H)
        b2_blocks.append((bias[:, None] * jnp.asarray(mask)[None, :])
                         .reshape(1, 5 * P))

    return {
        "w1": w1big, "b1": b1big,
        "w2": jnp.stack(w2_blocks),        # (3, 735, 245)
        "b2": jnp.stack(b2_blocks),        # (3, 1, 245)
    }


# ----------------------------------------------------------------------------
# Synthetic parameters + pure-JAX reference (mirrors the PyTorch forward)
# ----------------------------------------------------------------------------
def init_params(key, cin):
    ks = iter(jax.random.split(key, 24))
    nk = lambda: next(ks)
    p = {}
    p["conv1_w"] = 0.1 * jax.random.normal(nk(), (15, cin, 1, 1), jnp.float32)
    p["bn1_gamma"] = 1.0 + 0.1 * jax.random.normal(nk(), (15,), jnp.float32)
    p["bn1_beta"] = 0.1 * jax.random.normal(nk(), (15,), jnp.float32)
    p["bn1_mean"] = 0.1 * jax.random.normal(nk(), (15,), jnp.float32)
    p["bn1_var"] = jax.random.uniform(nk(), (15,), jnp.float32, 0.5, 1.5)
    for name in ("2_1", "2_2", "2_3"):
        p[f"conv{name}_w"] = 0.1 * jax.random.normal(nk(), (5, 5, 3, 3), jnp.float32)
        p[f"conv{name}_b"] = 0.1 * jax.random.normal(nk(), (5,), jnp.float32)
        p[f"bn{name}_gamma"] = 1.0 + 0.1 * jax.random.normal(nk(), (5,), jnp.float32)
        p[f"bn{name}_beta"] = 0.1 * jax.random.normal(nk(), (5,), jnp.float32)
        p[f"bn{name}_mean"] = 0.1 * jax.random.normal(nk(), (5,), jnp.float32)
        p[f"bn{name}_var"] = jax.random.uniform(nk(), (5,), jnp.float32, 0.5, 1.5)
    return p


def ref_forward(x, p):
    dn = ("NCHW", "OIHW", "NCHW")

    def bn(y, pre):
        g, be = p[f"{pre}_gamma"], p[f"{pre}_beta"]
        m, v = p[f"{pre}_mean"], p[f"{pre}_var"]
        inv = g / jnp.sqrt(v + EPS)
        return (y - m[None, :, None, None]) * inv[None, :, None, None] \
            + be[None, :, None, None]

    ori = jax.nn.relu(bn(lax.conv_general_dilated(
        x, p["conv1_w"], (1, 1), "VALID", dimension_numbers=dn), "bn1"))
    sq_in = ori[:, 0:5, :, :]
    hor_in = ori[:, 5:10, 2:5, :]
    ver_in = ori[:, 10:15, :, 2:5]

    def branch(inp, name):
        y = lax.conv_general_dilated(inp, p[f"conv{name}_w"], (1, 1),
                                     [(1, 1), (1, 1)], dimension_numbers=dn)
        y = y + p[f"conv{name}_b"][None, :, None, None]
        return jax.nn.relu(bn(y, f"bn{name}"))

    square = branch(sq_in, "2_1")
    horiz = branch(hor_in, "2_2")
    vert = branch(ver_in, "2_3")
    B = x.shape[0]
    hor_f = jnp.zeros((B, 5, H, W), jnp.float32).at[:, :, 2:5, :].set(horiz)
    ver_f = jnp.zeros((B, 5, H, W), jnp.float32).at[:, :, :, 2:5].set(vert)
    return square + hor_f + ver_f


if __name__ == "__main__":
    key = jax.random.PRNGKey(0)
    kx, kparam = jax.random.split(key)
    B, Cin = 2, 4                          # module forward requires 7x7 spatial
    x = jax.random.normal(kx, (B, Cin, H, W), jnp.float32)

    raw = init_params(kparam, Cin)
    folded = fold_params(raw, Cin)

    out = mrc_forward(x, folded)
    out = jax.block_until_ready(out)
    assert out.shape == (B, 5, H, W)

    ref = ref_forward(x, raw)
    err = float(jnp.max(jnp.abs(out - ref)))
    assert err < 1e-4, f"max abs err {err}"
    print("KERNEL_OK")
</pallas_src>

<mosaic_0001>
module attributes {stable_mosaic.version = 11 : i64} {
  func.func @mrc_kernel(%arg0: i32, %arg1: memref<2x196xf32, #tpu.memory_space<vmem>>, %arg2: memref<196x735xf32, #tpu.memory_space<vmem>>, %arg3: memref<1x735xf32, #tpu.memory_space<vmem>>, %arg4: memref<3x735x245xf32, #tpu.memory_space<vmem>>, %arg5: memref<3x1x245xf32, #tpu.memory_space<vmem>>, %arg6: memref<2x245xf32, #tpu.memory_space<vmem>>) attributes {dimension_semantics = [#tpu.dimension_semantics<parallel>], iteration_bounds = array<i64: 1>, scalar_prefetch = 0 : i64, scratch_operands = 0 : i64, tpu.core_type = #tpu.core_type<tc>, window_params = [{transform_indices = @transform_0, window_bounds = array<i64: 2, 196>}, {pipeline_mode = #tpu.pipeline_mode<synchronous>, transform_indices = @transform_1, window_bounds = array<i64: 196, 735>}, {pipeline_mode = #tpu.pipeline_mode<synchronous>, transform_indices = @transform_2, window_bounds = array<i64: 1, 735>}, {pipeline_mode = #tpu.pipeline_mode<synchronous>, transform_indices = @transform_3, window_bounds = array<i64: 3, 735, 245>}, {pipeline_mode = #tpu.pipeline_mode<synchronous>, transform_indices = @transform_4, window_bounds = array<i64: 3, 1, 245>}, {transform_indices = @transform_5, window_bounds = array<i64: 2, 245>}]} {
    %c0 = arith.constant 0 : index
    %c0_0 = arith.constant 0 : index
    %0 = vector.load %arg1[%c0, %c0_0] : memref<2x196xf32, #tpu.memory_space<vmem>>, vector<2x196xf32>
    %c0_1 = arith.constant 0 : index
    %c0_2 = arith.constant 0 : index
    %1 = vector.load %arg2[%c0_1, %c0_2] : memref<196x735xf32, #tpu.memory_space<vmem>>, vector<196x735xf32>
    %cst = arith.constant dense<0.000000e+00> : vector<2x735xf32>
    %2 = tpu.matmul %0, %1, %cst {dimension_numbers = #tpu.dot_dimension_numbers<[1], [0], [0], [1], [0, 0, 1, 1], [], []>} : vector<2x196xf32>, vector<196x735xf32>, vector<2x735xf32> -> vector<2x735xf32>
    %c0_3 = arith.constant 0 : index
    %c0_4 = arith.constant 0 : index
    %3 = vector.load %arg3[%c0_3, %c0_4] : memref<1x735xf32, #tpu.memory_space<vmem>>, vector<1x735xf32>
    %4 = vector.broadcast %3 : vector<1x735xf32> to vector<2x735xf32>
    %5 = arith.addf %2, %4 : vector<2x735xf32>
    %cst_5 = arith.constant 0.000000e+00 : f32
    %6 = vector.broadcast %cst_5 : f32 to vector<2x735xf32>
    %7 = arith.maximumf %5, %6 : vector<2x735xf32>
    %cst_6 = arith.constant 0.000000e+00 : f32
    %8 = vector.broadcast %cst_6 : f32 to vector<2x245xf32>
    %c0_7 = arith.constant 0 : index
    %c0_8 = arith.constant 0 : index
    %c0_9 = arith.constant 0 : index
    %9 = vector.load %arg4[%c0_7, %c0_8, %c0_9] : memref<3x735x245xf32, #tpu.memory_space<vmem>>, vector<1x735x245xf32>
    %10 = vector.shape_cast %9 : vector<1x735x245xf32> to vector<735x245xf32>
    %cst_10 = arith.constant dense<0.000000e+00> : vector<2x245xf32>
    %11 = tpu.matmul %7, %10, %cst_10 {dimension_numbers = #tpu.dot_dimension_numbers<[1], [0], [0], [1], [0, 0, 1, 1], [], []>} : vector<2x735xf32>, vector<735x245xf32>, vector<2x245xf32> -> vector<2x245xf32>
    %c0_11 = arith.constant 0 : index
    %c0_12 = arith.constant 0 : index
    %c0_13 = arith.constant 0 : index
    %12 = vector.load %arg5[%c0_11, %c0_12, %c0_13] : memref<3x1x245xf32, #tpu.memory_space<vmem>>, vector<1x1x245xf32>
    %13 = vector.shape_cast %12 : vector<1x1x245xf32> to vector<1x245xf32>
    %14 = vector.broadcast %13 : vector<1x245xf32> to vector<2x245xf32>
    %15 = arith.addf %11, %14 : vector<2x245xf32>
    %cst_14 = arith.constant 0.000000e+00 : f32
    %16 = vector.broadcast %cst_14 : f32 to vector<2x245xf32>
    %17 = arith.maximumf %15, %16 : vector<2x245xf32>
    %18 = arith.addf %8, %17 : vector<2x245xf32>
    %c1 = arith.constant 1 : index
    %c0_15 = arith.constant 0 : index
    %c0_16 = arith.constant 0 : index
    %19 = vector.load %arg4[%c1, %c0_15, %c0_16] : memref<3x735x245xf32, #tpu.memory_space<vmem>>, vector<1x735x245xf32>
    %20 = vector.shape_cast %19 : vector<1x735x245xf32> to vector<735x245xf32>
    %cst_17 = arith.constant dense<0.000000e+00> : vector<2x245xf32>
    %21 = tpu.matmul %7, %20, %cst_17 {dimension_numbers = #tpu.dot_dimension_numbers<[1], [0], [0], [1], [0, 0, 1, 1], [], []>} : vector<2x735xf32>, vector<735x245xf32>, vector<2x245xf32> -> vector<2x245xf32>
    %c1_18 = arith.constant 1 : index
    %c0_19 = arith.constant 0 : index
    %c0_20 = arith.constant 0 : index
    %22 = vector.load %arg5[%c1_18, %c0_19, %c0_20] : memref<3x1x245xf32, #tpu.memory_space<vmem>>, vector<1x1x245xf32>
    %23 = vector.shape_cast %22 : vector<1x1x245xf32> to vector<1x245xf32>
    %24 = vector.broadcast %23 : vector<1x245xf32> to vector<2x245xf32>
    %25 = arith.addf %21, %24 : vector<2x245xf32>
    %cst_21 = arith.constant 0.000000e+00 : f32
    %26 = vector.broadcast %cst_21 : f32 to vector<2x245xf32>
    %27 = arith.maximumf %25, %26 : vector<2x245xf32>
    %28 = arith.addf %18, %27 : vector<2x245xf32>
    %c2 = arith.constant 2 : index
    %c0_22 = arith.constant 0 : index
    %c0_23 = arith.constant 0 : index
    %29 = vector.load %arg4[%c2, %c0_22, %c0_23] : memref<3x735x245xf32, #tpu.memory_space<vmem>>, vector<1x735x245xf32>
    %30 = vector.shape_cast %29 : vector<1x735x245xf32> to vector<735x245xf32>
    %cst_24 = arith.constant dense<0.000000e+00> : vector<2x245xf32>
    %31 = tpu.matmul %7, %30, %cst_24 {dimension_numbers = #tpu.dot_dimension_numbers<[1], [0], [0], [1], [0, 0, 1, 1], [], []>} : vector<2x735xf32>, vector<735x245xf32>, vector<2x245xf32> -> vector<2x245xf32>
    %c2_25 = arith.constant 2 : index
    %c0_26 = arith.constant 0 : index
    %c0_27 = arith.constant 0 : index
    %32 = vector.load %arg5[%c2_25, %c0_26, %c0_27] : memref<3x1x245xf32, #tpu.memory_space<vmem>>, vector<1x1x245xf32>
    %33 = vector.shape_cast %32 : vector<1x1x245xf32> to vector<1x245xf32>
    %34 = vector.broadcast %33 : vector<1x245xf32> to vector<2x245xf32>
    %35 = arith.addf %31, %34 : vector<2x245xf32>
    %cst_28 = arith.constant 0.000000e+00 : f32
    %36 = vector.broadcast %cst_28 : f32 to vector<2x245xf32>
    %37 = arith.maximumf %35, %36 : vector<2x245xf32>
    %38 = arith.addf %28, %37 : vector<2x245xf32>
    %c0_29 = arith.constant 0 : index
    %c0_30 = arith.constant 0 : index
    %39 = vector.load %arg6[%c0_29, %c0_30] : memref<2x245xf32, #tpu.memory_space<vmem>>, vector<2x245xf32>
    tpu.vector_store %arg6[%c0_29, %c0_30], %38 {strides = array<i32>} : memref<2x245xf32, #tpu.memory_space<vmem>>, vector<2x245xf32>,
    return
  }
  func.func @transform_0(%arg0: i32) -> (i32, i32) {
    %c0_i32 = arith.constant 0 : i32
    %c0_i32_0 = arith.constant 0 : i32
    return %arg0, %c0_i32 : i32, i32
  }
  func.func @transform_1(%arg0: i32) -> (i32, i32) {
    %c0_i32 = arith.constant 0 : i32
    %c0_i32_0 = arith.constant 0 : i32
    %c0_i32_1 = arith.constant 0 : i32
    return %c0_i32, %c0_i32_0 : i32, i32
  }
  func.func @transform_2(%arg0: i32) -> (i32, i32) {
    %c0_i32 = arith.constant 0 : i32
    %c0_i32_0 = arith.constant 0 : i32
    %c0_i32_1 = arith.constant 0 : i32
    return %c0_i32, %c0_i32_0 : i32, i32
  }
  func.func @transform_3(%arg0: i32) -> (i32, i32, i32) {
    %c0_i32 = arith.constant 0 : i32
    %c0_i32_0 = arith.constant 0 : i32
    %c0_i32_1 = arith.constant 0 : i32
    %c0_i32_2 = arith.constant 0 : i32
    return %c0_i32, %c0_i32_0, %c0_i32_1 : i32, i32, i32
  }
  func.func @transform_4(%arg0: i32) -> (i32, i32, i32) {
    %c0_i32 = arith.constant 0 : i32
    %c0_i32_0 = arith.constant 0 : i32
    %c0_i32_1 = arith.constant 0 : i32
    %c0_i32_2 = arith.constant 0 : i32
    return %c0_i32, %c0_i32_0, %c0_i32_1 : i32, i32, i32
  }
  func.func @transform_5(%arg0: i32) -> (i32, i32) {
    %c0_i32 = arith.constant 0 : i32
    %c0_i32_0 = arith.constant 0 : i32
    return %arg0, %c0_i32 : i32, i32
  }
}

</mosaic_0001>

<llo_original>
// kernel: mrc_forward.1
$region0: #{mrc_forward.1}
  #allocation0 [shape = 'u32[]', space=smem, size = 0x4, offset = 0x4, fixed_abs, tag = 'smem constant byte address 0x4 - core index']
  #allocation1 [shape = 'u32[144,128]{1,0:T(1,128)}', space=vmem, size = 0x12000, scoped, tag = 'internal scratch']
  %s0 = inlined_call_operand.vmem [shape: f32[2,196], index: 0, kind: input, shape index: {}]
  %s1 = inlined_call_operand.hbm [shape: f32[196,735], index: 1, kind: input, shape index: {}]
  %s2 = inlined_call_operand.hbm [shape: f32[1,735], index: 2, kind: input, shape index: {}]
  %s3 = inlined_call_operand.hbm [shape: f32[3,735,245], index: 3, kind: input, shape index: {}]
  %s4 = inlined_call_operand.hbm [shape: f32[3,1,245], index: 4, kind: input, shape index: {}]
  %s5 = inlined_call_operand.vmem [shape: f32[2,245], index: 5, kind: output, shape index: {}]
  %s6 = sld [smem:[#allocation0]]
  $region46: #{mrc_forward.1} parent=0
    _
  %s8 = ssub.s32 1, %s6
  %s9 = scalar_select 0, %s8, %s6
  $region1: #{mrc_forward.1} parent=0
    #allocation2 [shape = 'u8[614400]{0}', space=vmem, size = 0x96000, scoped, tag = 'input window, operand 1, single buffered']
    #allocation3 [shape = 's32[1]{0}', space=sflag, size = 0x4, scoped, tag = 'scoped memory for mrc_forward.1']
    #allocation4 [shape = 'u8[3072]{0}', space=vmem, size = 0xc00, scoped, tag = 'input window, operand 2, single buffered']
    #allocation5 [shape = 's32[1]{0}', space=sflag, size = 0x4, scoped, tag = 'scoped memory for mrc_forward.1']
    #allocation6 [shape = 'u8[2260992]{0}', space=vmem, size = 0x228000, scoped, tag = 'input window, operand 3, single buffered']
    #allocation7 [shape = 'u8[3072]{0}', space=vmem, size = 0xc00, scoped, tag = 'input window, operand 4, single buffered']
    #allocation8 [shape = 's32[1]{0}', space=sflag, size = 0x4, scoped, tag = 'scoped memory for mrc_forward.1']
    %10 = vsyncpa [#allocation3], 0
    %11 = vsyncpa [#allocation5], 0
    %12 = vsyncpa [#allocation8], 0
    // Predicated region
    $region2: #{mrc_forward.1} parent=1 // pred_check
      _
    $region3: #{mrc_forward.1} parent=1 // pred_check_branch
      %14 = sbr.rel (0) target = $region5
    $region4: #{mrc_forward.1} parent=1 // pred_region
      _
    $region5: #{mrc_forward.1} parent=1 // pred_fallthru
      _
    // Predicated region
    $region6: #{mrc_forward.1} parent=1 // pred_check
      _
    $region7: #{mrc_forward.1} parent=1 // pred_check_branch
      %16 = sbr.rel (0) target = $region9
    $region8: #{mrc_forward.1} parent=1 // pred_region
      %s18 = ssub.s32 19200, 19200
      %19 = vsyncadd [#allocation3], %s18
      %s20 = sshll.u32 [#allocation2], 4
      %s21 = int_to_ptr.vmem [resolvable:$true] %s20
      %26 = dma.hbm_to_vmem [thread:$0]  %s1, 19200, %s21, [#allocation3], 768, 768, 48
    $region9: #{mrc_forward.1} parent=1 // pred_fallthru
      _
    // Predicated region
    $region10: #{mrc_forward.1} parent=1 // pred_check
      _
    $region11: #{mrc_forward.1} parent=1 // pred_check_branch
      %28 = sbr.rel (0) target = $region13
    $region12: #{mrc_forward.1} parent=1 // pred_region
      %s30 = ssub.s32 96, 96
      %31 = vsyncadd [#allocation5], %s30
      %s33 = sshll.u32 [#allocation4], 4
      %s34 = int_to_ptr.vmem [resolvable:$true] %s33
      %36 = dma.hbm_to_vmem [thread:$0]  %s2, 96, %s34, [#allocation5]
    $region13: #{mrc_forward.1} parent=1 // pred_fallthru
      _
    // Predicated region
    $region14: #{mrc_forward.1} parent=1 // pred_check
      _
    $region15: #{mrc_forward.1} parent=1 // pred_check_branch
      %38 = sbr.rel (0) target = $region17
    $region16: #{mrc_forward.1} parent=1 // pred_region
      %s40 = ssub.s32 70656, 70656
      %41 = vsyncadd [#allocation5], %s40
      %s42 = sshll.u32 [#allocation6], 4
      %s43 = int_to_ptr.vmem [resolvable:$true] %s42
      %48 = dma.hbm_to_vmem [thread:$0]  %s3, 70656, %s43, [#allocation5], 256, 256, 16
    $region17: #{mrc_forward.1} parent=1 // pred_fallthru
      _
    // Predicated region
    $region18: #{mrc_forward.1} parent=1 // pred_check
      _
    $region19: #{mrc_forward.1} parent=1 // pred_check_branch
      %50 = sbr.rel (0) target = $region21
    $region20: #{mrc_forward.1} parent=1 // pred_region
      %s52 = ssub.s32 96, 96
      %53 = vsyncadd [#allocation8], %s52
      %s54 = sshll.u32 [#allocation7], 4
      %s55 = int_to_ptr.vmem [resolvable:$true] %s54
      %60 = dma.hbm_to_vmem [thread:$0]  %s4, 96, %s55, [#allocation8], 32, 32, 2
    $region21: #{mrc_forward.1} parent=1 // pred_fallthru
      _
    // Predicated region
    $region22: #{mrc_forward.1} parent=1 // pred_check
      _
    $region23: #{mrc_forward.1} parent=1 // pred_check_branch
      %62 = sbr.rel (0) target = $region25
    $region24: #{mrc_forward.1} parent=1 // pred_region
      %63 = dma.done [#allocation3], 19200
    $region25: #{mrc_forward.1} parent=1 // pred_fallthru
      _
    // Predicated region
    $region26: #{mrc_forward.1} parent=1 // pred_check
      _
    $region27: #{mrc_forward.1} parent=1 // pred_check_branch
      %65 = sbr.rel (0) target = $region29
    $region28: #{mrc_forward.1} parent=1 // pred_region
      %66 = dma.done [#allocation5], 96
    $region29: #{mrc_forward.1} parent=1 // pred_fallthru
      _
    // Predicated region
    $region30: #{mrc_forward.1} parent=1 // pred_check
      _
    $region31: #{mrc_forward.1} parent=1 // pred_check_branch
      %68 = sbr.rel (0) target = $region33
    $region32: #{mrc_forward.1} parent=1 // pred_region
      %69 = dma.done [#allocation5], 70656
    $region33: #{mrc_forward.1} parent=1 // pred_fallthru
      _
    // Predicated region
    $region34: #{mrc_forward.1} parent=1 // pred_check
      _
    $region35: #{mrc_forward.1} parent=1 // pred_check_branch
      %71 = sbr.rel (0) target = $region37
    $region36: #{mrc_forward.1} parent=1 // pred_region
      %72 = dma.done [#allocation8], 96
    $region37: #{mrc_forward.1} parent=1 // pred_fallthru
      _
    %v73 = vld [vmem:[%s0] sm:$0xf]
    %v74 = vld [vmem:[#allocation2] sm:$0xff]
    %v75 = vld [vmem:[#allocation2 + $0x8] sm:$0xff]
    %v76 = vld [vmem:[#allocation2 + $0x10] sm:$0xff]
    %v77 = vld [vmem:[#allocation2 + $0x18] sm:$0xff]
    %v78 = vld [vmem:[#allocation2 + $0x20] sm:$0xff]
    %v79 = vld [vmem:[#allocation2 + $0x28] sm:$0xff]
    %v80 = vld [vmem:[#allocation2 + $0x30] sm:$0xff]
    %v81 = vld [vmem:[#allocation2 + $0x38] sm:$0xff]
    %v82 = vld [vmem:[#allocation2 + $0x40] sm:$0xff]
    %v83 = vld [vmem:[#allocation2 + $0x48] sm:$0xff]
    %v84 = vld [vmem:[#allocation2 + $0x50] sm:$0xff]
    %v85 = vld [vmem:[#allocation2 + $0x58] sm:$0xff]
    %v86 = vld [vmem:[#allocation2 + $0x60] sm:$0xff]
    %v87 = vld [vmem:[#allocation2 + $0x68] sm:$0xff]
    %v88 = vld [vmem:[#allocation2 + $0x70] sm:$0xff]
    %v89 = vld [vmem:[#allocation2 + $0x78] sm:$0xff]
    %v90 = vld [vmem:[#allocation2 + $0x80] sm:$0xff]
    %v91 = vld [vmem:[#allocation2 + $0x88] sm:$0xff]
    %v92 = vld [vmem:[#allocation2 + $0x90] sm:$0xff]
    %v93 = vld [vmem:[#allocation2 + $0x98] sm:$0xff]
    %v94 = vld [vmem:[#allocation2 + $0xa0] sm:$0xff]
    %v95 = vld [vmem:[#allocation2 + $0xa8] sm:$0xff]
    %v96 = vld [vmem:[#allocation2 + $0xb0] sm:$0xff]
    %v97 = vld [vmem:[#allocation2 + $0xb8] sm:$0xff]
    %v98 = vld [vmem:[#allocation2 + $0xc0] sm:$0xff]
    %v99 = vld [vmem:[#allocation2 + $0xc8] sm:$0xff]
    %v100 = vld [vmem:[#allocation2 + $0xd0] sm:$0xff]
    %v101 = vld [vmem:[#allocation2 + $0xd8] sm:$0xff]
    %v102 = vld [vmem:[#allocation2 + $0xe0] sm:$0xff]
    %v103 = vld [vmem:[#allocation2 + $0xe8] sm:$0xff]
    %v104 = vld [vmem:[#allocation2 + $0xf0] sm:$0xff]
    %v105 = vld [vmem:[#allocation2 + $0xf8] sm:$0xff]
    %v106 = vld [vmem:[#allocation2 + $0x100] sm:$0xff]
    %v107 = vld [vmem:[#allocation2 + $0x108] sm:$0xff]
    %v108 = vld [vmem:[#allocation2 + $0x110] sm:$0xff]
    %v109 = vld [vmem:[#allocation2 + $0x118] sm:$0xff]
    %v110 = vld [vmem:[#allocation2 + $0x120] sm:$0xff]
    %v111 = vld [vmem:[#allocation2 + $0x128] sm:$0xff]
    %v112 = vld [vmem:[#allocation2 + $0x130] sm:$0xff]
    %v113 = vld [vmem:[#allocation2 + $0x138] sm:$0xff]
    %v114 = vld [vmem:[#allocation2 + $0x140] sm:$0xff]
    %v115 = vld [vmem:[#allocation2 + $0x148] sm:$0xff]
    %v116 = vld [vmem:[#allocation2 + $0x150] sm:$0xff]
    %v117 = vld [vmem:[#allocation2 + $0x158] sm:$0xff]
    %v118 = vld [vmem:[#allocation2 + $0x160] sm:$0xff]
    %v119 = vld [vmem:[#allocation2 + $0x168] sm:$0xff]
    %v120 = vld [vmem:[#allocation2 + $0x170] sm:$0xff]
    %v121 = vld [vmem:[#allocation2 + $0x178] sm:$0xff]
    %v122 = vld [vmem:[#allocation2 + $0x180] sm:$0xff]
    %v123 = vld [vmem:[#allocation2 + $0x188] sm:$0xff]
    %v124 = vld [vmem:[#allocation2 + $0x190] sm:$0xff]
    %v125 = vld [vmem:[#allocation2 + $0x198] sm:$0xff]
    %v126 = vld [vmem:[#allocation2 + $0x1a0] sm:$0xff]
    %v127 = vld [vmem:[#allocation2 + $0x1a8] sm:$0xff]
    %v128 = vld [vmem:[#allocation2 + $0x1b0] sm:$0xff]
    %v129 = vld [vmem:[#allocation2 + $0x1b8] sm:$0xff]
    %v130 = vld [vmem:[#allocation2 + $0x1c0] sm:$0xff]
    %v131 = vld [vmem:[#allocation2 + $0x1c8] sm:$0xff]
    %v132 = vld [vmem:[#allocation2 + $0x1d0] sm:$0xff]
    %v133 = vld [vmem:[#allocation2 + $0x1d8] sm:$0xff]
    %v134 = vld [vmem:[#allocation2 + $0x1e0] sm:$0xff]
    %v135 = vld [vmem:[#allocation2 + $0x1e8] sm:$0xff]
    %v136 = vld [vmem:[#allocation2 + $0x1f0] sm:$0xff]
    %v137 = vld [vmem:[#allocation2 + $0x1f8] sm:$0xff]
    %v138 = vld [vmem:[#allocation2 + $0x200] sm:$0xff]
    %v139 = vld [vmem:[#allocation2 + $0x208] sm:$0xff]
    %v140 = vld [vmem:[#allocation2 + $0x210] sm:$0xff]
    %v141 = vld [vmem:[#allocation2 + $0x218] sm:$0xff]
    %v142 = vld [vmem:[#allocation2 + $0x220] sm:$0xff]
    %v143 = vld [vmem:[#allocation2 + $0x228] sm:$0xff]
    %v144 = vld [vmem:[#allocation2 + $0x230] sm:$0xff]
    %v145 = vld [vmem:[#allocation2 + $0x238] sm:$0xff]
    %v146 = vld [vmem:[#allocation2 + $0x240] sm:$0xff]
    %v147 = vld [vmem:[#allocation2 + $0x248] sm:$0xff]
    %v148 = vld [vmem:[#allocation2 + $0x250] sm:$0xff]
    %v149 = vld [vmem:[#allocation2 + $0x258] sm:$0xff]
    %v150 = vld [vmem:[#allocation2 + $0x260] sm:$0xff]
    %v151 = vld [vmem:[#allocation2 + $0x268] sm:$0xff]
    %v152 = vld [vmem:[#allocation2 + $0x270] sm:$0xff]
    %v153 = vld [vmem:[#allocation2 + $0x278] sm:$0xff]
    %v154 = vld [vmem:[#allocation2 + $0x280] sm:$0xff]
    %v155 = vld [vmem:[#allocation2 + $0x288] sm:$0xff]
    %v156 = vld [vmem:[#allocation2 + $0x290] sm:$0xff]
    %v157 = vld [vmem:[#allocation2 + $0x298] sm:$0xff]
    %v158 = vld [vmem:[#allocation2 + $0x2a0] sm:$0xff]
    %v159 = vld [vmem:[#allocation2 + $0x2a8] sm:$0xff]
    %v160 = vld [vmem:[#allocation2 + $0x2b0] sm:$0xff]
    %v161 = vld [vmem:[#allocation2 + $0x2b8] sm:$0xff]
    %v162 = vld [vmem:[#allocation2 + $0x2c0] sm:$0xff]
    %v163 = vld [vmem:[#allocation2 + $0x2c8] sm:$0xff]
    %v164 = vld [vmem:[#allocation2 + $0x2d0] sm:$0xff]
    %v165 = vld [vmem:[#allocation2 + $0x2d8] sm:$0xff]
    %v166 = vld [vmem:[#allocation2 + $0x2e0] sm:$0xff]
    %v167 = vld [vmem:[#allocation2 + $0x2e8] sm:$0xff]
    %v168 = vld [vmem:[#allocation2 + $0x2f0] sm:$0xff]
    %v169 = vld [vmem:[#allocation2 + $0x2f8] sm:$0xff]
    %v170 = vld [vmem:[#allocation2 + $0x300] sm:$0xff]
    %v171 = vld [vmem:[#allocation2 + $0x308] sm:$0xff]
    %v172 = vld [vmem:[#allocation2 + $0x310] sm:$0xff]
    %v173 = vld [vmem:[#allocation2 + $0x318] sm:$0xff]
    %v174 = vld [vmem:[#allocation2 + $0x320] sm:$0xff]
    %v175 = vld [vmem:[#allocation2 + $0x328] sm:$0xff]
    %v176 = vld [vmem:[#allocation2 + $0x330] sm:$0xff]
    %v177 = vld [vmem:[#allocation2 + $0x338] sm:$0xff]
    %v178 = vld [vmem:[#allocation2 + $0x340] sm:$0xff]
    %v179 = vld [vmem:[#allocation2 + $0x348] sm:$0xff]
    %v180 = vld [vmem:[#allocation2 + $0x350] sm:$0xff]
    %v181 = vld [vmem:[#allocation2 + $0x358] sm:$0xff]
    %v182 = vld [vmem:[#allocation2 + $0x360] sm:$0xff]
    %v183 = vld [vmem:[#allocation2 + $0x368] sm:$0xff]
    %v184 = vld [vmem:[#allocation2 + $0x370] sm:$0xff]
    %v185 = vld [vmem:[#allocation2 + $0x378] sm:$0xff]
    %v186 = vld [vmem:[#allocation2 + $0x380] sm:$0xff]
    %v187 = vld [vmem:[#allocation2 + $0x388] sm:$0xff]
    %v188 = vld [vmem:[#allocation2 + $0x390] sm:$0xff]
    %v189 = vld [vmem:[#allocation2 + $0x398] sm:$0xff]
    %v190 = vld [vmem:[#allocation2 + $0x3a0] sm:$0xff]
    %v191 = vld [vmem:[#allocation2 + $0x3a8] sm:$0xff]
    %v192 = vld [vmem:[#allocation2 + $0x3b0] sm:$0xff]
    %v193 = vld [vmem:[#allocation2 + $0x3b8] sm:$0xff]
    %v194 = vld [vmem:[#allocation2 + $0x3c0] sm:$0xff]
    %v195 = vld [vmem:[#allocation2 + $0x3c8] sm:$0xff]
    %v196 = vld [vmem:[#allocation2 + $0x3d0] sm:$0xff]
    %v197 = vld [vmem:[#allocation2 + $0x3d8] sm:$0xff]
    %v198 = vld [vmem:[#allocation2 + $0x3e0] sm:$0xff]
    %v199 = vld [vmem:[#allocation2 + $0x3e8] sm:$0xff]
    %v200 = vld [vmem:[#allocation2 + $0x3f0] sm:$0xff]
    %v201 = vld [vmem:[#allocation2 + $0x3f8] sm:$0xff]
    %v202 = vld [vmem:[#allocation2 + $0x400] sm:$0xff]
    %v203 = vld [vmem:[#allocation2 + $0x408] sm:$0xff]
    %v204 = vld [vmem:[#allocation2 + $0x410] sm:$0xff]
    %v205 = vld [vmem:[#allocation2 + $0x418] sm:$0xff]
    %v206 = vld [vmem:[#allocation2 + $0x420] sm:$0xff]
    %v207 = vld [vmem:[#allocation2 + $0x428] sm:$0xff]
    %v208 = vld [vmem:[#allocation2 + $0x430] sm:$0xff]
    %v209 = vld [vmem:[#allocation2 + $0x438] sm:$0xff]
    %v210 = vld [vmem:[#allocation2 + $0x440] sm:$0xff]
    %v211 = vld [vmem:[#allocation2 + $0x448] sm:$0xff]
    %v212 = vld [vmem:[#allocation2 + $0x450] sm:$0xff]
    %v213 = vld [vmem:[#allocation2 + $0x458] sm:$0xff]
    %v214 = vld [vmem:[#allocation2 + $0x460] sm:$0xff]
    %v215 = vld [vmem:[#allocation2 + $0x468] sm:$0xff]
    %v216 = vld [vmem:[#allocation2 + $0x470] sm:$0xff]
    %v217 = vld [vmem:[#allocation2 + $0x478] sm:$0xff]
    %v218 = vld [vmem:[#allocation2 + $0x480] sm:$0xf]
    %v219 = vld [vmem:[#allocation2 + $0x488] sm:$0xf]
    %v220 = vld [vmem:[#allocation2 + $0x490] sm:$0xf]
    %v221 = vld [vmem:[#allocation2 + $0x498] sm:$0xf]
    %v222 = vld [vmem:[#allocation2 + $0x4a0] sm:$0xf]
    %v223 = vld [vmem:[#allocation2 + $0x4a8] sm:$0xf]
    %v224 = vld [vmem:[#allocation4] sm:$0x3f]
    %v226 = vlaneseq
    %v227 = vshrl.u32 %v226, 7
    %v228 = vsub.s32 0, %v227
    %v229 = vrot.slane %v224, %v228
    %v230 = vlaneseq
    %v231 = vshrl.u32 %v230, 7
    %v232 = vsub.s32 1, %v231
    %v233 = vrot.slane %v224, %v232
    %v234 = vlaneseq
    %v235 = vshrl.u32 %v234, 7
    %v236 = vsub.s32 2, %v235
    %v237 = vrot.slane %v224, %v236
    %v238 = vlaneseq
    %v239 = vshrl.u32 %v238, 7
    %v240 = vsub.s32 3, %v239
    %v241 = vrot.slane %v224, %v240
    %v242 = vlaneseq
    %v243 = vshrl.u32 %v242, 7
    %v244 = vsub.s32 4, %v243
    %v245 = vrot.slane %v224, %v244
    %v246 = vlaneseq
    %v247 = vshrl.u32 %v246, 7
    %v248 = vsub.s32 5, %v247
    %v249 = vrot.slane %v224, %v248
    %v258 = vunpack.c.l.s4 1983009808
    %v259 = vunpack.c.0.s8 %v258
    %v260 = vlaneseq
    %v261 = vshrl.u32 %v260, 7
    %v262 = vsub.s32 %v259, %v261
    %v263 = vrot.slane %v73, %v262
    %v264 = vcombine.high %v263, %v263
    %vm266 = vcmask 556032
    %v267 = vsel %vm266, %v264, 0
    %vm269 = vcmask 1043456
    %v271 = vsel %vm269, %v218, 0
    %v274 = vsel %vm269, %v219, 0
    %v277 = vsel %vm269, %v220, 0
    %v280 = vsel %vm269, %v221, 0
    %v283 = vsel %vm269, %v222, 0
    %v286 = vsel %vm269, %v223, 0
    %288 = vmatprep.subr.mxu0 %v165
    %289 = vmatpush1.msra.mxu0 %v164
    %290 = vmatprep.subr.mxu0 %v159
    %291 = vmatpush1.msra.mxu0 %v158
    %292 = vmatprep.subr.mxu0 %v153
    %293 = vmatpush1.msra.mxu0 %v152
    %294 = vmatprep.subr.mxu0 %v147
    %295 = vmatpush1.msra.mxu0 %v146
    %296 = vmatprep.subr.mxu0 %v141
    %297 = vmatpush1.msra.mxu0 %v140
    %298 = vmatprep.subr.mxu0 %v135
    %299 = vmatpush1.msra.mxu0 %v134
    %300 = vmatprep.subr.mxu0 %v129
    %301 = vmatpush1.msra.mxu0 %v128
    %302 = vmatprep.subr.mxu0 %v123
    %303 = vmatpush1.msra.mxu0 %v122
    %304 = vmatprep.subr.mxu0 %v117
    %305 = vmatpush1.msra.mxu0 %v116
    %306 = vmatprep.subr.mxu0 %v111
    %307 = vmatpush1.msra.mxu0 %v110
    %308 = vmatprep.subr.mxu0 %v105
    %309 = vmatpush1.msra.mxu0 %v104
    %310 = vmatprep.subr.mxu0 %v99
    %311 = vmatpush1.msra.mxu0 %v98
    %312 = vmatprep.subr.mxu0 %v93
    %313 = vmatpush1.msra.mxu0 %v92
    %314 = vmatprep.subr.mxu0 %v87
    %315 = vmatpush1.msra.mxu0 %v86
    %316 = vmatprep.subr.mxu0 %v81
    %317 = vmatpush1.msra.mxu0 %v80
    %318 = vmatprep.subr.mxu0 %v75
    %319 = vmatpush1.msra.mxu0 %v74
    %320 = vmatprep.subr.mxu0 0.0
    %321 = vmatpush2.msra.mxu0 0.0
    %322 = vmatprep.subr.mxu0 0.0
    %323 = vmatpush2.msra.mxu0 0.0
    %324 = vmatprep.subr.mxu0 0.0
    %325 = vmatpush2.msra.mxu0 0.0
    %326 = vmatprep.subr.mxu0 0.0
    %327 = vmatpush2.msra.mxu0 0.0
    %328 = vmatprep.subr.mxu0 0.0
    %329 = vmatpush2.msra.mxu0 0.0
    %330 = vmatprep.subr.mxu0 0.0
    %331 = vmatpush2.msra.mxu0 0.0
    %332 = vmatprep.subr.mxu0 0.0
    %333 = vmatpush2.msra.mxu0 0.0
    %334 = vmatprep.subr.mxu0 %v274
    %335 = vmatpush2.msra.mxu0 %v271
    %336 = vmatprep.subr.mxu0 %v213
    %337 = vmatpush2.msra.mxu0 %v212
    %338 = vmatprep.subr.mxu0 %v207
    %339 = vmatpush2.msra.mxu0 %v206
    %340 = vmatprep.subr.mxu0 %v201
    %341 = vmatpush2.msra.mxu0 %v200
    %342 = vmatprep.subr.mxu0 %v195
    %343 = vmatpush2.msra.mxu0 %v194
    %344 = vmatprep.subr.mxu0 %v189
    %345 = vmatpush2.msra.mxu0 %v188
    %346 = vmatprep.subr.mxu0 %v183
    %347 = vmatpush2.msra.mxu0 %v182
    %348 = vmatprep.subr.mxu0 %v177
    %349 = vmatpush2.msra.mxu0 %v176
    %350 = vmatprep.subr.mxu0 %v171
    %351 = vmatpush2.msra.mxu0 %v170
    %352 = vmatprep.mubr.f32.mxu0 %v267
    %353 = vmatmul.mubr.f32.gmra.mxu0 %v263
    %v354 = vpop.f32.mrf.mxu0
    %v355 = vadd.f32 %v229, %v354
    %v356 = vpop.f32.mrf.mxu0
    %v357 = vadd.f32 %v233, %v356
    %358 = vdwg.mxu0
    %359 = vmatprep.subr.mxu0 %v167
    %360 = vmatpush1.msra.mxu0 %v166
    %361 = vmatprep.subr.mxu0 %v161
    %362 = vmatpush1.msra.mxu0 %v160
    %363 = vmatprep.subr.mxu0 %v155
    %364 = vmatpush1.msra.mxu0 %v154
    %365 = vmatprep.subr.mxu0 %v149
    %366 = vmatpush1.msra.mxu0 %v148
    %367 = vmatprep.subr.mxu0 %v143
    %368 = vmatpush1.msra.mxu0 %v142
    %369 = vmatprep.subr.mxu0 %v137
    %370 = vmatpush1.msra.mxu0 %v136
    %371 = vmatprep.subr.mxu0 %v131
    %372 = vmatpush1.msra.mxu0 %v130
    %373 = vmatprep.subr.mxu0 %v125
    %374 = vmatpush1.msra.mxu0 %v124
    %375 = vmatprep.subr.mxu0 %v119
    %376 = vmatpush1.msra.mxu0 %v118
    %377 = vmatprep.subr.mxu0 %v113
    %378 = vmatpush1.msra.mxu0 %v112
    %379 = vmatprep.subr.mxu0 %v107
    %380 = vmatpush1.msra.mxu0 %v106
    %381 = vmatprep.subr.mxu0 %v101
    %382 = vmatpush1.msra.mxu0 %v100
    %383 = vmatprep.subr.mxu0 %v95
    %384 = vmatpush1.msra.mxu0 %v94
    %385 = vmatprep.subr.mxu0 %v89
    %386 = vmatpush1.msra.mxu0 %v88
    %387 = vmatprep.subr.mxu0 %v83
    %388 = vmatpush1.msra.mxu0 %v82
    %389 = vmatprep.subr.mxu0 %v77
    %390 = vmatpush1.msra.mxu0 %v76
    %391 = vmatprep.subr.mxu0 0.0
    %392 = vmatpush2.msra.mxu0 0.0
    %393 = vmatprep.subr.mxu0 0.0
    %394 = vmatpush2.msra.mxu0 0.0
    %395 = vmatprep.subr.mxu0 0.0
    %396 = vmatpush2.msra.mxu0 0.0
    %397 = vmatprep.subr.mxu0 0.0
    %398 = vmatpush2.msra.mxu0 0.0
    %399 = vmatprep.subr.mxu0 0.0
    %400 = vmatpush2.msra.mxu0 0.0
    %401 = vmatprep.subr.mxu0 0.0
    %402 = vmatpush2.msra.mxu0 0.0
    %403 = vmatprep.subr.mxu0 0.0
    %404 = vmatpush2.msra.mxu0 0.0
    %405 = vmatprep.subr.mxu0 %v280
    %406 = vmatpush2.msra.mxu0 %v277
    %407 = vmatprep.subr.mxu0 %v215
    %408 = vmatpush2.msra.mxu0 %v214
    %409 = vmatprep.subr.mxu0 %v209
    %410 = vmatpush2.msra.mxu0 %v208
    %411 = vmatprep.subr.mxu0 %v203
    %412 = vmatpush2.msra.mxu0 %v202
    %413 = vmatprep.subr.mxu0 %v197
    %414 = vmatpush2.msra.mxu0 %v196
    %415 = vmatprep.subr.mxu0 %v191
    %416 = vmatpush2.msra.mxu0 %v190
    %417 = vmatprep.subr.mxu0 %v185
    %418 = vmatpush2.msra.mxu0 %v184
    %419 = vmatprep.subr.mxu0 %v179
    %420 = vmatpush2.msra.mxu0 %v178
    %421 = vmatprep.subr.mxu0 %v173
    %422 = vmatpush2.msra.mxu0 %v172
    %423 = vmatprep.mubr.f32.mxu0 %v267
    %424 = vmatmul.mubr.f32.gmra.mxu0 %v263
    %v425 = vpop.f32.mrf.mxu0
    %v426 = vadd.f32 %v237, %v425
    %v427 = vpop.f32.mrf.mxu0
    %v428 = vadd.f32 %v241, %v427
    %429 = vdwg.mxu0
    %430 = vmatprep.subr.mxu0 %v169
    %431 = vmatpush1.msra.mxu0 %v168
    %432 = vmatprep.subr.mxu0 %v163
    %433 = vmatpush1.msra.mxu0 %v162
    %434 = vmatprep.subr.mxu0 %v157
    %435 = vmatpush1.msra.mxu0 %v156
    %436 = vmatprep.subr.mxu0 %v151
    %437 = vmatpush1.msra.mxu0 %v150
    %438 = vmatprep.subr.mxu0 %v145
    %439 = vmatpush1.msra.mxu0 %v144
    %440 = vmatprep.subr.mxu0 %v139
    %441 = vmatpush1.msra.mxu0 %v138
    %442 = vmatprep.subr.mxu0 %v133
    %443 = vmatpush1.msra.mxu0 %v132
    %444 = vmatprep.subr.mxu0 %v127
    %445 = vmatpush1.msra.mxu0 %v126
    %446 = vmatprep.subr.mxu0 %v121
    %447 = vmatpush1.msra.mxu0 %v120
    %448 = vmatprep.subr.mxu0 %v115
    %449 = vmatpush1.msra.mxu0 %v114
    %450 = vmatprep.subr.mxu0 %v109
    %451 = vmatpush1.msra.mxu0 %v108
    %452 = vmatprep.subr.mxu0 %v103
    %453 = vmatpush1.msra.mxu0 %v102
    %454 = vmatprep.subr.mxu0 %v97
    %455 = vmatpush1.msra.mxu0 %v96
    %456 = vmatprep.subr.mxu0 %v91
    %457 = vmatpush1.msra.mxu0 %v90
    %458 = vmatprep.subr.mxu0 %v85
    %459 = vmatpush1.msra.mxu0 %v84
    %460 = vmatprep.subr.mxu0 %v79
    %461 = vmatpush1.msra.mxu0 %v78
    %462 = vmatprep.subr.mxu0 0.0
    %463 = vmatpush2.msra.mxu0 0.0
    %464 = vmatprep.subr.mxu0 0.0
    %465 = vmatpush2.msra.mxu0 0.0
    %466 = vmatprep.subr.mxu0 0.0
    %467 = vmatpush2.msra.mxu0 0.0
    %468 = vmatprep.subr.mxu0 0.0
    %469 = vmatpush2.msra.mxu0 0.0
    %470 = vmatprep.subr.mxu0 0.0
    %471 = vmatpush2.msra.mxu0 0.0
    %472 = vmatprep.subr.mxu0 0.0
    %473 = vmatpush2.msra.mxu0 0.0
    %474 = vmatprep.subr.mxu0 0.0
    %475 = vmatpush2.msra.mxu0 0.0
    %476 = vmatprep.subr.mxu0 %v286
    %477 = vmatpush2.msra.mxu0 %v283
    %478 = vmatprep.subr.mxu0 %v217
    %479 = vmatpush2.msra.mxu0 %v216
    %480 = vmatprep.subr.mxu0 %v211
    %481 = vmatpush2.msra.mxu0 %v210
    %482 = vmatprep.subr.mxu0 %v205
    %483 = vmatpush2.msra.mxu0 %v204
    %484 = vmatprep.subr.mxu0 %v199
    %485 = vmatpush2.msra.mxu0 %v198
    %486 = vmatprep.subr.mxu0 %v193
    %487 = vmatpush2.msra.mxu0 %v192
    %488 = vmatprep.subr.mxu0 %v187
    %489 = vmatpush2.msra.mxu0 %v186
    %490 = vmatprep.subr.mxu0 %v181
    %491 = vmatpush2.msra.mxu0 %v180
    %492 = vmatprep.subr.mxu0 %v175
    %493 = vmatpush2.msra.mxu0 %v174
    %494 = vmatprep.mubr.f32.mxu0 %v267
    %495 = vmatmul.mubr.f32.gmra.mxu0 %v263
    %v496 = vpop.f32.mrf.mxu0
    %v497 = vadd.f32 %v245, %v496
    %v498 = vpop.f32.mrf.mxu0
    %v499 = vadd.f32 %v249, %v498
    %500 = vdwg.mxu0
    %v501 = vmax.f32 %v355, 0.0
    %v502 = vmax.f32 %v357, 0.0
    %v503 = vmax.f32 %v426, 0.0
    %v504 = vmax.f32 %v428, 0.0
    %v505 = vmax.f32 %v497, 0.0
    %v506 = vmax.f32 %v499, 0.0
    %v507 = vld [vmem:[#allocation6] sm:$0xff]
    %v508 = vld [vmem:[#allocation6 + $0x8] sm:$0xff]
    %v509 = vld [vmem:[#allocation6 + $0x10] sm:$0xff]
    %v510 = vld [vmem:[#allocation6 + $0x18] sm:$0xff]
    %v511 = vld [vmem:[#allocation6 + $0x20] sm:$0xff]
    %v512 = vld [vmem:[#allocation6 + $0x28] sm:$0xff]
    %v513 = vld [vmem:[#allocation6 + $0x30] sm:$0xff]
    %v514 = vld [vmem:[#allocation6 + $0x38] sm:$0xff]
    %v515 = vld [vmem:[#allocation6 + $0x40] sm:$0xff]
    %v516 = vld [vmem:[#allocation6 + $0x48] sm:$0xff]
    %v517 = vld [vmem:[#allocation6 + $0x50] sm:$0xff]
    %v518 = vld [vmem:[#allocation6 + $0x58] sm:$0xff]
    %v519 = vld [vmem:[#allocation6 + $0x60] sm:$0xff]
    %v520 = vld [vmem:[#allocation6 + $0x68] sm:$0xff]
    %v521 = vld [vmem:[#allocation6 + $0x70] sm:$0xff]
    %v522 = vld [vmem:[#allocation6 + $0x78] sm:$0xff]
    %v523 = vld [vmem:[#allocation6 + $0x80] sm:$0xff]
    %v524 = vld [vmem:[#allocation6 + $0x88] sm:$0xff]
    %v525 = vld [vmem:[#allocation6 + $0x90] sm:$0xff]
    %v526 = vld [vmem:[#allocation6 + $0x98] sm:$0xff]
    %v527 = vld [vmem:[#allocation6 + $0xa0] sm:$0xff]
    %v528 = vld [vmem:[#allocation6 + $0xa8] sm:$0xff]
    %v529 = vld [vmem:[#allocation6 + $0xb0] sm:$0xff]
    %v530 = vld [vmem:[#allocation6 + $0xb8] sm:$0xff]
    %v531 = vld [vmem:[#allocation6 + $0xc0] sm:$0xff]
    %v532 = vld [vmem:[#allocation6 + $0xc8] sm:$0xff]
    %v533 = vld [vmem:[#allocation6 + $0xd0] sm:$0xff]
    %v534 = vld [vmem:[#allocation6 + $0xd8] sm:$0xff]
    %v535 = vld [vmem:[#allocation6 + $0xe0] sm:$0xff]
    %v536 = vld [vmem:[#allocation6 + $0xe8] sm:$0xff]
    %v537 = vld [vmem:[#allocation6 + $0xf0] sm:$0xff]
    %v538 = vld [vmem:[#allocation6 + $0xf8] sm:$0xff]
    %v539 = vld [vmem:[#allocation6 + $0x100] sm:$0xff]
    %v540 = vld [vmem:[#allocation6 + $0x108] sm:$0xff]
    %v541 = vld [vmem:[#allocation6 + $0x110] sm:$0xff]
    %v542 = vld [vmem:[#allocation6 + $0x118] sm:$0xff]
    %v543 = vld [vmem:[#allocation6 + $0x120] sm:$0xff]
    %v544 = vld [vmem:[#allocation6 + $0x128] sm:$0xff]
    %v545 = vld [vmem:[#allocation6 + $0x130] sm:$0xff]
    %v546 = vld [vmem:[#allocation6 + $0x138] sm:$0xff]
    %v547 = vld [vmem:[#allocation6 + $0x140] sm:$0xff]
    %v548 = vld [vmem:[#allocation6 + $0x148] sm:$0xff]
    %v549 = vld [vmem:[#allocation6 + $0x150] sm:$0xff]
    %v550 = vld [vmem:[#allocation6 + $0x158] sm:$0xff]
    %v551 = vld [vmem:[#allocation6 + $0x160] sm:$0xff]
    %v552 = vld [vmem:[#allocation6 + $0x168] sm:$0xff]
    %v553 = vld [vmem:[#allocation6 + $0x170] sm:$0xff]
    %v554 = vld [vmem:[#allocation6 + $0x178] sm:$0xff]
    %v555 = vld [vmem:[#allocation6 + $0x180] sm:$0xff]
    %v556 = vld [vmem:[#allocation6 + $0x188] sm:$0xff]
    %v557 = vld [vmem:[#allocation6 + $0x190] sm:$0xff]
    %v558 = vld [vmem:[#allocation6 + $0x198] sm:$0xff]
    %v559 = vld [vmem:[#allocation6 + $0x1a0] sm:$0xff]
    %v560 = vld [vmem:[#allocation6 + $0x1a8] sm:$0xff]
    %v561 = vld [vmem:[#allocation6 + $0x1b0] sm:$0xff]
    %v562 = vld [vmem:[#allocation6 + $0x1b8] sm:$0xff]
    %v563 = vld [vmem:[#allocation6 + $0x1c0] sm:$0xff]
    %v564 = vld [vmem:[#allocation6 + $0x1c8] sm:$0xff]
    %v565 = vld [vmem:[#allocation6 + $0x1d0] sm:$0xff]
    %v566 = vld [vmem:[#allocation6 + $0x1d8] sm:$0xff]
    %v567 = vld [vmem:[#allocation6 + $0x1e0] sm:$0xff]
    %v568 = vld [vmem:[#allocation6 + $0x1e8] sm:$0xff]
    %v569 = vld [vmem:[#allocation6 + $0x1f0] sm:$0xff]
    %v570 = vld [vmem:[#allocation6 + $0x1f8] sm:$0xff]
    %v571 = vld [vmem:[#allocation6 + $0x200] sm:$0xff]
    %v572 = vld [vmem:[#allocation6 + $0x208] sm:$0xff]
    %v573 = vld [vmem:[#allocation6 + $0x210] sm:$0xff]
    %v574 = vld [vmem:[#allocation6 + $0x218] sm:$0xff]
    %v575 = vld [vmem:[#allocation6 + $0x220] sm:$0xff]
    %v576 = vld [vmem:[#allocation6 + $0x228] sm:$0xff]
    %v577 = vld [vmem:[#allocation6 + $0x230] sm:$0xff]
    %v578 = vld [vmem:[#allocation6 + $0x238] sm:$0xff]
    %v579 = vld [vmem:[#allocation6 + $0x240] sm:$0xff]
    %v580 = vld [vmem:[#allocation6 + $0x248] sm:$0xff]
    %v581 = vld [vmem:[#allocation6 + $0x250] sm:$0xff]
    %v582 = vld [vmem:[#allocation6 + $0x258] sm:$0xff]
    %v583 = vld [vmem:[#allocation6 + $0x260] sm:$0xff]
    %v584 = vld [vmem:[#allocation6 + $0x268] sm:$0xff]
    %v585 = vld [vmem:[#allocation6 + $0x270] sm:$0xff]
    %v586 = vld [vmem:[#allocation6 + $0x278] sm:$0xff]
    %v587 = vld [vmem:[#allocation6 + $0x280] sm:$0xff]
    %v588 = vld [vmem:[#allocation6 + $0x288] sm:$0xff]
    %v589 = vld [vmem:[#allocation6 + $0x290] sm:$0xff]
    %v590 = vld [vmem:[#allocation6 + $0x298] sm:$0xff]
    %v591 = vld [vmem:[#allocation6 + $0x2a0] sm:$0xff]
    %v592 = vld [vmem:[#allocation6 + $0x2a8] sm:$0xff]
    %v593 = vld [vmem:[#allocation6 + $0x2b0] sm:$0xff]
    %v594 = vld [vmem:[#allocation6 + $0x2b8] sm:$0xff]
    %v595 = vld [vmem:[#allocation6 + $0x2c0] sm:$0xff]
    %v596 = vld [vmem:[#allocation6 + $0x2c8] sm:$0xff]
    %v597 = vld [vmem:[#allocation6 + $0x2d0] sm:$0xff]
    %v598 = vld [vmem:[#allocation6 + $0x2d8] sm:$0xff]
    %v599 = vld [vmem:[#allocation6 + $0x2e0] sm:$0xff]
    %v600 = vld [vmem:[#allocation6 + $0x2e8] sm:$0xff]
    %v601 = vld [vmem:[#allocation6 + $0x2f0] sm:$0xff]
    %v602 = vld [vmem:[#allocation6 + $0x2f8] sm:$0xff]
    %v603 = vld [vmem:[#allocation6 + $0x300] sm:$0xff]
    %v604 = vld [vmem:[#allocation6 + $0x308] sm:$0xff]
    %v605 = vld [vmem:[#allocation6 + $0x310] sm:$0xff]
    %v606 = vld [vmem:[#allocation6 + $0x318] sm:$0xff]
    %v607 = vld [vmem:[#allocation6 + $0x320] sm:$0xff]
    %v608 = vld [vmem:[#allocation6 + $0x328] sm:$0xff]
    %v609 = vld [vmem:[#allocation6 + $0x330] sm:$0xff]
    %v610 = vld [vmem:[#allocation6 + $0x338] sm:$0xff]
    %v611 = vld [vmem:[#allocation6 + $0x340] sm:$0xff]
    %v612 = vld [vmem:[#allocation6 + $0x348] sm:$0xff]
    %v613 = vld [vmem:[#allocation6 + $0x350] sm:$0xff]
    %v614 = vld [vmem:[#allocation6 + $0x358] sm:$0xff]
    %v615 = vld [vmem:[#allocation6 + $0x360] sm:$0xff]
    %v616 = vld [vmem:[#allocation6 + $0x368] sm:$0xff]
    %v617 = vld [vmem:[#allocation6 + $0x370] sm:$0xff]
    %v618 = vld [vmem:[#allocation6 + $0x378] sm:$0xff]
    %v619 = vld [vmem:[#allocation6 + $0x380] sm:$0xff]
    %v620 = vld [vmem:[#allocation6 + $0x388] sm:$0xff]
    %v621 = vld [vmem:[#allocation6 + $0x390] sm:$0xff]
    %v622 = vld [vmem:[#allocation6 + $0x398] sm:$0xff]
    %v623 = vld [vmem:[#allocation6 + $0x3a0] sm:$0xff]
    %v624 = vld [vmem:[#allocation6 + $0x3a8] sm:$0xff]
    %v625 = vld [vmem:[#allocation6 + $0x3b0] sm:$0xff]
    %v626 = vld [vmem:[#allocation6 + $0x3b8] sm:$0xff]
    %v627 = vld [vmem:[#allocation6 + $0x3c0] sm:$0xff]
    %v628 = vld [vmem:[#allocation6 + $0x3c8] sm:$0xff]
    %v629 = vld [vmem:[#allocation6 + $0x3d0] sm:$0xff]
    %v630 = vld [vmem:[#allocation6 + $0x3d8] sm:$0xff]
    %v631 = vld [vmem:[#allocation6 + $0x3e0] sm:$0xff]
    %v632 = vld [vmem:[#allocation6 + $0x3e8] sm:$0xff]
    %v633 = vld [vmem:[#allocation6 + $0x3f0] sm:$0xff]
    %v634 = vld [vmem:[#allocation6 + $0x3f8] sm:$0xff]
    %v635 = vld [vmem:[#allocation6 + $0x400] sm:$0xff]
    %v636 = vld [vmem:[#allocation6 + $0x408] sm:$0xff]
    %v637 = vld [vmem:[#allocation6 + $0x410] sm:$0xff]
    %v638 = vld [vmem:[#allocation6 + $0x418] sm:$0xff]
    %v639 = vld [vmem:[#allocation6 + $0x420] sm:$0xff]
    %v640 = vld [vmem:[#allocation6 + $0x428] sm:$0xff]
    %v641 = vld [vmem:[#allocation6 + $0x430] sm:$0xff]
    %v642 = vld [vmem:[#allocation6 + $0x438] sm:$0xff]
    %v643 = vld [vmem:[#allocation6 + $0x440] sm:$0xff]
    %v644 = vld [vmem:[#allocation6 + $0x448] sm:$0xff]
    %v645 = vld [vmem:[#allocation6 + $0x450] sm:$0xff]
    %v646 = vld [vmem:[#allocation6 + $0x458] sm:$0xff]
    %v647 = vld [vmem:[#allocation6 + $0x460] sm:$0xff]
    %v648 = vld [vmem:[#allocation6 + $0x468] sm:$0xff]
    %v649 = vld [vmem:[#allocation6 + $0x470] sm:$0xff]
    %v650 = vld [vmem:[#allocation6 + $0x478] sm:$0xff]
    %v651 = vld [vmem:[#allocation6 + $0x480] sm:$0xff]
    %v652 = vld [vmem:[#allocation6 + $0x488] sm:$0xff]
    %v653 = vld [vmem:[#allocation6 + $0x490] sm:$0xff]
    %v654 = vld [vmem:[#allocation6 + $0x498] sm:$0xff]
    %v655 = vld [vmem:[#allocation6 + $0x4a0] sm:$0xff]
    %v656 = vld [vmem:[#allocation6 + $0x4a8] sm:$0xff]
    %v657 = vld [vmem:[#allocation6 + $0x4b0] sm:$0xff]
    %v658 = vld [vmem:[#allocation6 + $0x4b8] sm:$0xff]
    %v659 = vld [vmem:[#allocation6 + $0x4c0] sm:$0xff]
    %v660 = vld [vmem:[#allocation6 + $0x4c8] sm:$0xff]
    %v661 = vld [vmem:[#allocation6 + $0x4d0] sm:$0xff]
    %v662 = vld [vmem:[#allocation6 + $0x4d8] sm:$0xff]
    %v663 = vld [vmem:[#allocation6 + $0x4e0] sm:$0xff]
    %v664 = vld [vmem:[#allocation6 + $0x4e8] sm:$0xff]
    %v665 = vld [vmem:[#allocation6 + $0x4f0] sm:$0xff]
    %v666 = vld [vmem:[#allocation6 + $0x4f8] sm:$0xff]
    %v667 = vld [vmem:[#allocation6 + $0x500] sm:$0xff]
    %v668 = vld [vmem:[#allocation6 + $0x508] sm:$0xff]
    %v669 = vld [vmem:[#allocation6 + $0x510] sm:$0xff]
    %v670 = vld [vmem:[#allocation6 + $0x518] sm:$0xff]
    %v671 = vld [vmem:[#allocation6 + $0x520] sm:$0xff]
    %v672 = vld [vmem:[#allocation6 + $0x528] sm:$0xff]
    %v673 = vld [vmem:[#allocation6 + $0x530] sm:$0xff]
    %v674 = vld [vmem:[#allocation6 + $0x538] sm:$0xff]
    %v675 = vld [vmem:[#allocation6 + $0x540] sm:$0xff]
    %v676 = vld [vmem:[#allocation6 + $0x548] sm:$0xff]
    %v677 = vld [vmem:[#allocation6 + $0x550] sm:$0xff]
    %v678 = vld [vmem:[#allocation6 + $0x558] sm:$0xff]
    %v679 = vld [vmem:[#allocation6 + $0x560] sm:$0xff]
    %v680 = vld [vmem:[#allocation6 + $0x568] sm:$0xff]
    %v681 = vld [vmem:[#allocation6 + $0x570] sm:$0xff]
    %v682 = vld [vmem:[#allocation6 + $0x578] sm:$0xff]
    %v683 = vld [vmem:[#allocation6 + $0x580] sm:$0xff]
    %v684 = vld [vmem:[#allocation6 + $0x588] sm:$0xff]
    %v685 = vld [vmem:[#allocation6 + $0x590] sm:$0xff]
    %v686 = vld [vmem:[#allocation6 + $0x598] sm:$0xff]
    %v687 = vld [vmem:[#allocation6 + $0x5a0] sm:$0xff]
    %v688 = vld [vmem:[#allocation6 + $0x5a8] sm:$0xff]
    %v689 = vld [vmem:[#allocation6 + $0x5b0] sm:$0x7f]
    %v690 = vld [vmem:[#allocation6 + $0x5b8] sm:$0x7f]
    %v691 = vld [vmem:[#allocation7] sm:$0x3]
    %v693 = vlaneseq
    %v694 = vshrl.u32 %v693, 7
    %v695 = vsub.s32 0, %v694
    %v696 = vrot.slane %v691, %v695
    %v697 = vlaneseq
    %v698 = vshrl.u32 %v697, 7
    %v699 = vsub.s32 1, %v698
    %v700 = vrot.slane %v691, %v699
    %vm703 = vcmask 777216
    %v705 = vsel %vm703, %v506, 0
    %vm707 = vcmask 1046528
    %v709 = vsel %vm707, %v689, 0
    %v712 = vsel %vm707, %v690, 0
    %714 = vmatprep.subr.mxu0 %v538
    %715 = vmatpush1.msra.mxu0 %v537
    %716 = vmatprep.subr.mxu0 %v536
    %717 = vmatpush1.msra.mxu0 %v535
    %718 = vmatprep.subr.mxu0 %v534
    %719 = vmatpush1.msra.mxu0 %v533
    %720 = vmatprep.subr.mxu0 %v532
    %721 = vmatpush1.msra.mxu0 %v531
    %722 = vmatprep.subr.mxu0 %v530
    %723 = vmatpush1.msra.mxu0 %v529
    %724 = vmatprep.subr.mxu0 %v528
    %725 = vmatpush1.msra.mxu0 %v527
    %726 = vmatprep.subr.mxu0 %v526
    %727 = vmatpush1.msra.mxu0 %v525
    %728 = vmatprep.subr.mxu0 %v524
    %729 = vmatpush1.msra.mxu0 %v523
    %730 = vmatprep.subr.mxu0 %v522
    %731 = vmatpush1.msra.mxu0 %v521
    %732 = vmatprep.subr.mxu0 %v520
    %733 = vmatpush1.msra.mxu0 %v519
    %734 = vmatprep.subr.mxu0 %v518
    %735 = vmatpush1.msra.mxu0 %v517
    %736 = vmatprep.subr.mxu0 %v516
    %737 = vmatpush1.msra.mxu0 %v515
    %738 = vmatprep.subr.mxu0 %v514
    %739 = vmatpush1.msra.mxu0 %v513
    %740 = vmatprep.subr.mxu0 %v512
    %741 = vmatpush1.msra.mxu0 %v511
    %742 = vmatprep.subr.mxu0 %v510
    %743 = vmatpush1.msra.mxu0 %v509
    %744 = vmatprep.subr.mxu0 %v508
    %745 = vmatpush1.msra.mxu0 %v507
    %746 = vmatprep.subr.mxu0 %v570
    %747 = vmatpush2.msra.mxu0 %v569
    %748 = vmatprep.subr.mxu0 %v568
    %749 = vmatpush2.msra.mxu0 %v567
    %750 = vmatprep.subr.mxu0 %v566
    %751 = vmatpush2.msra.mxu0 %v565
    %752 = vmatprep.subr.mxu0 %v564
    %753 = vmatpush2.msra.mxu0 %v563
    %754 = vmatprep.subr.mxu0 %v562
    %755 = vmatpush2.msra.mxu0 %v561
    %756 = vmatprep.subr.mxu0 %v560
    %757 = vmatpush2.msra.mxu0 %v559
    %758 = vmatprep.subr.mxu0 %v558
    %759 = vmatpush2.msra.mxu0 %v557
    %760 = vmatprep.subr.mxu0 %v556
    %761 = vmatpush2.msra.mxu0 %v555
    %762 = vmatprep.subr.mxu0 %v554
    %763 = vmatpush2.msra.mxu0 %v553
    %764 = vmatprep.subr.mxu0 %v552
    %765 = vmatpush2.msra.mxu0 %v551
    %766 = vmatprep.subr.mxu0 %v550
    %767 = vmatpush2.msra.mxu0 %v549
    %768 = vmatprep.subr.mxu0 %v548
    %769 = vmatpush2.msra.mxu0 %v547
    %770 = vmatprep.subr.mxu0 %v546
    %771 = vmatpush2.msra.mxu0 %v545
    %772 = vmatprep.subr.mxu0 %v544
    %773 = vmatpush2.msra.mxu0 %v543
    %774 = vmatprep.subr.mxu0 %v542
    %775 = vmatpush2.msra.mxu0 %v541
    %776 = vmatprep.subr.mxu0 %v540
    %777 = vmatpush2.msra.mxu0 %v539
    %778 = vmatprep.mubr.f32.mxu0 %v502
    %779 = vmatmul.mubr.f32.gmra.mxu0 %v501
    %v780 = vpop.f32.mrf.mxu0
    %v781 = vadd.f32 %v696, %v780
    %v782 = vpop.f32.mrf.mxu0
    %v783 = vadd.f32 %v700, %v782
    %784 = vdwg.mxu0
    %785 = vmatprep.subr.mxu0 %v602
    %786 = vmatpush1.msra.mxu0 %v601
    %787 = vmatprep.subr.mxu0 %v600
    %788 = vmatpush1.msra.mxu0 %v599
    %789 = vmatprep.subr.mxu0 %v598
    %790 = vmatpush1.msra.mxu0 %v597
    %791 = vmatprep.subr.mxu0 %v596
    %792 = vmatpush1.msra.mxu0 %v595
    %793 = vmatprep.subr.mxu0 %v594
    %794 = vmatpush1.msra.mxu0 %v593
    %795 = vmatprep.subr.mxu0 %v592
    %796 = vmatpush1.msra.mxu0 %v591
    %797 = vmatprep.subr.mxu0 %v590
    %798 = vmatpush1.msra.mxu0 %v589
    %799 = vmatprep.subr.mxu0 %v588
    %800 = vmatpush1.msra.mxu0 %v587
    %801 = vmatprep.subr.mxu0 %v586
    %802 = vmatpush1.msra.mxu0 %v585
    %803 = vmatprep.subr.mxu0 %v584
    %804 = vmatpush1.msra.mxu0 %v583
    %805 = vmatprep.subr.mxu0 %v582
    %806 = vmatpush1.msra.mxu0 %v581
    %807 = vmatprep.subr.mxu0 %v580
    %808 = vmatpush1.msra.mxu0 %v579
    %809 = vmatprep.subr.mxu0 %v578
    %810 = vmatpush1.msra.mxu0 %v577
    %811 = vmatprep.subr.mxu0 %v576
    %812 = vmatpush1.msra.mxu0 %v575
    %813 = vmatprep.subr.mxu0 %v574
    %814 = vmatpush1.msra.mxu0 %v573
    %815 = vmatprep.subr.mxu0 %v572
    %816 = vmatpush1.msra.mxu0 %v571
    %817 = vmatprep.subr.mxu0 %v634
    %818 = vmatpush2.msra.mxu0 %v633
    %819 = vmatprep.subr.mxu0 %v632
    %820 = vmatpush2.msra.mxu0 %v631
    %821 = vmatprep.subr.mxu0 %v630
    %822 = vmatpush2.msra.mxu0 %v629
    %823 = vmatprep.subr.mxu0 %v628
    %824 = vmatpush2.msra.mxu0 %v627
    %825 = vmatprep.subr.mxu0 %v626
    %826 = vmatpush2.msra.mxu0 %v625
    %827 = vmatprep.subr.mxu0 %v624
    %828 = vmatpush2.msra.mxu0 %v623
    %829 = vmatprep.subr.mxu0 %v622
    %830 = vmatpush2.msra.mxu0 %v621
    %831 = vmatprep.subr.mxu0 %v620
    %832 = vmatpush2.msra.mxu0 %v619
    %833 = vmatprep.subr.mxu0 %v618
    %834 = vmatpush2.msra.mxu0 %v617
    %835 = vmatprep.subr.mxu0 %v616
    %836 = vmatpush2.msra.mxu0 %v615
    %837 = vmatprep.subr.mxu0 %v614
    %838 = vmatpush2.msra.mxu0 %v613
    %839 = vmatprep.subr.mxu0 %v612
    %840 = vmatpush2.msra.mxu0 %v611
    %841 = vmatprep.subr.mxu0 %v610
    %842 = vmatpush2.msra.mxu0 %v609
    %843 = vmatprep.subr.mxu0 %v608
    %844 = vmatpush2.msra.mxu0 %v607
    %845 = vmatprep.subr.mxu0 %v606
    %846 = vmatpush2.msra.mxu0 %v605
    %847 = vmatprep.subr.mxu0 %v604
    %848 = vmatpush2.msra.mxu0 %v603
    %849 = vmatprep.mubr.f32.mxu0 %v504
    %850 = vmatmul.mubr.f32.gmra.mxu0 %v503
    %v851 = vpop.f32.mrf.mxu0
    %v852 = vadd.f32 %v781, %v851
    %v853 = vpop.f32.mrf.mxu0
    %v854 = vadd.f32 %v783, %v853
    %855 = vdwg.mxu0
    %856 = vmatprep.subr.mxu0 %v666
    %857 = vmatpush1.msra.mxu0 %v665
    %858 = vmatprep.subr.mxu0 %v664
    %859 = vmatpush1.msra.mxu0 %v663
    %860 = vmatprep.subr.mxu0 %v662
    %861 = vmatpush1.msra.mxu0 %v661
    %862 = vmatprep.subr.mxu0 %v660
    %863 = vmatpush1.msra.mxu0 %v659
    %864 = vmatprep.subr.mxu0 %v658
    %865 = vmatpush1.msra.mxu0 %v657
    %866 = vmatprep.subr.mxu0 %v656
    %867 = vmatpush1.msra.mxu0 %v655
    %868 = vmatprep.subr.mxu0 %v654
    %869 = vmatpush1.msra.mxu0 %v653
    %870 = vmatprep.subr.mxu0 %v652
    %871 = vmatpush1.msra.mxu0 %v651
    %872 = vmatprep.subr.mxu0 %v650
    %873 = vmatpush1.msra.mxu0 %v649
    %874 = vmatprep.subr.mxu0 %v648
    %875 = vmatpush1.msra.mxu0 %v647
    %876 = vmatprep.subr.mxu0 %v646
    %877 = vmatpush1.msra.mxu0 %v645
    %878 = vmatprep.subr.mxu0 %v644
    %879 = vmatpush1.msra.mxu0 %v643
    %880 = vmatprep.subr.mxu0 %v642
    %881 = vmatpush1.msra.mxu0 %v641
    %882 = vmatprep.subr.mxu0 %v640
    %883 = vmatpush1.msra.mxu0 %v639
    %884 = vmatprep.subr.mxu0 %v638
    %885 = vmatpush1.msra.mxu0 %v637
    %886 = vmatprep.subr.mxu0 %v636
    %887 = vmatpush1.msra.mxu0 %v635
    %888 = vmatprep.subr.mxu0 0.0
    %889 = vmatpush2.msra.mxu0 0.0
    %890 = vmatprep.subr.mxu0 0.0
    %891 = vmatpush2.msra.mxu0 0.0
    %892 = vmatprep.subr.mxu0 0.0
    %893 = vmatpush2.msra.mxu0 0.0
    %894 = vmatprep.subr.mxu0 0.0
    %895 = vmatpush2.msra.mxu0 0.0
    %896 = vmatprep.subr.mxu0 %v712
    %897 = vmatpush2.msra.mxu0 %v709
    %898 = vmatprep.subr.mxu0 %v688
    %899 = vmatpush2.msra.mxu0 %v687
    %900 = vmatprep.subr.mxu0 %v686
    %901 = vmatpush2.msra.mxu0 %v685
    %902 = vmatprep.subr.mxu0 %v684
    %903 = vmatpush2.msra.mxu0 %v683
    %904 = vmatprep.subr.mxu0 %v682
    %905 = vmatpush2.msra.mxu0 %v681
    %906 = vmatprep.subr.mxu0 %v680
    %907 = vmatpush2.msra.mxu0 %v679
    %908 = vmatprep.subr.mxu0 %v678
    %909 = vmatpush2.msra.mxu0 %v677
    %910 = vmatprep.subr.mxu0 %v676
    %911 = vmatpush2.msra.mxu0 %v675
    %912 = vmatprep.subr.mxu0 %v674
    %913 = vmatpush2.msra.mxu0 %v673
    %914 = vmatprep.subr.mxu0 %v672
    %915 = vmatpush2.msra.mxu0 %v671
    %916 = vmatprep.subr.mxu0 %v670
    %917 = vmatpush2.msra.mxu0 %v669
    %918 = vmatprep.subr.mxu0 %v668
    %919 = vmatpush2.msra.mxu0 %v667
    %920 = vmatprep.mubr.f32.mxu0 %v705
    %921 = vmatmul.mubr.f32.gmra.mxu0 %v505
    %v922 = vpop.f32.mrf.mxu0
    %v923 = vadd.f32 %v852, %v922
    %v924 = vpop.f32.mrf.mxu0
    %v925 = vadd.f32 %v854, %v924
    %926 = vdwg.mxu0
    %v927 = vmax.f32 %v923, 0.0
    %v928 = vmax.f32 %v925, 0.0
    %v929 = vadd.f32 %v927, 0.0
    %v930 = vadd.f32 %v928, 0.0
    %s931 = scalar_lea.vmem [#allocation6], 1472
    %v932 = vld [vmem:[%s931] sm:$0xff]
    %v933 = vld [vmem:[%s931 + $0x8] sm:$0xff]
    %v934 = vld [vmem:[%s931 + $0x10] sm:$0xff]
    %v935 = vld [vmem:[%s931 + $0x18] sm:$0xff]
    %v936 = vld [vmem:[%s931 + $0x20] sm:$0xff]
    %v937 = vld [vmem:[%s931 + $0x28] sm:$0xff]
    %v938 = vld [vmem:[%s931 + $0x30] sm:$0xff]
    %v939 = vld [vmem:[%s931 + $0x38] sm:$0xff]
    %v940 = vld [vmem:[%s931 + $0x40] sm:$0xff]
    %v941 = vld [vmem:[%s931 + $0x48] sm:$0xff]
    %v942 = vld [vmem:[%s931 + $0x50] sm:$0xff]
    %v943 = vld [vmem:[%s931 + $0x58] sm:$0xff]
    %v944 = vld [vmem:[%s931 + $0x60] sm:$0xff]
    %v945 = vld [vmem:[%s931 + $0x68] sm:$0xff]
    %v946 = vld [vmem:[%s931 + $0x70] sm:$0xff]
    %v947 = vld [vmem:[%s931 + $0x78] sm:$0xff]
    %v948 = vld [vmem:[%s931 + $0x80] sm:$0xff]
    %v949 = vld [vmem:[%s931 + $0x88] sm:$0xff]
    %v950 = vld [vmem:[%s931 + $0x90] sm:$0xff]
    %v951 = vld [vmem:[%s931 + $0x98] sm:$0xff]
    %v952 = vld [vmem:[%s931 + $0xa0] sm:$0xff]
    %v953 = vld [vmem:[%s931 + $0xa8] sm:$0xff]
    %v954 = vld [vmem:[%s931 + $0xb0] sm:$0xff]
    %v955 = vld [vmem:[%s931 + $0xb8] sm:$0xff]
    %v956 = vld [vmem:[%s931 + $0xc0] sm:$0xff]
    %v957 = vld [vmem:[%s931 + $0xc8] sm:$0xff]
    %v958 = vld [vmem:[%s931 + $0xd0] sm:$0xff]
    %v959 = vld [vmem:[%s931 + $0xd8] sm:$0xff]
    %v960 = vld [vmem:[%s931 + $0xe0] sm:$0xff]
    %v961 = vld [vmem:[%s931 + $0xe8] sm:$0xff]
    %v962 = vld [vmem:[%s931 + $0xf0] sm:$0xff]
    %v963 = vld [vmem:[%s931 + $0xf8] sm:$0xff]
    %v964 = vld [vmem:[%s931 + $0x100] sm:$0xff]
    %v965 = vld [vmem:[%s931 + $0x108] sm:$0xff]
    %v966 = vld [vmem:[%s931 + $0x110] sm:$0xff]
    %v967 = vld [vmem:[%s931 + $0x118] sm:$0xff]
    %v968 = vld [vmem:[%s931 + $0x120] sm:$0xff]
    %v969 = vld [vmem:[%s931 + $0x128] sm:$0xff]
    %v970 = vld [vmem:[%s931 + $0x130] sm:$0xff]
    %v971 = vld [vmem:[%s931 + $0x138] sm:$0xff]
    %v972 = vld [vmem:[%s931 + $0x140] sm:$0xff]
    %v973 = vld [vmem:[%s931 + $0x148] sm:$0xff]
    %v974 = vld [vmem:[%s931 + $0x150] sm:$0xff]
    %v975 = vld [vmem:[%s931 + $0x158] sm:$0xff]
    %v976 = vld [vmem:[%s931 + $0x160] sm:$0xff]
    %v977 = vld [vmem:[%s931 + $0x168] sm:$0xff]
    %v978 = vld [vmem:[%s931 + $0x170] sm:$0xff]
    %v979 = vld [vmem:[%s931 + $0x178] sm:$0xff]
    %v980 = vld [vmem:[%s931 + $0x180] sm:$0xff]
    %v981 = vld [vmem:[%s931 + $0x188] sm:$0xff]
    %v982 = vld [vmem:[%s931 + $0x190] sm:$0xff]
    %v983 = vld [vmem:[%s931 + $0x198] sm:$0xff]
    %v984 = vld [vmem:[%s931 + $0x1a0] sm:$0xff]
    %v985 = vld [vmem:[%s931 + $0x1a8] sm:$0xff]
    %v986 = vld [vmem:[%s931 + $0x1b0] sm:$0xff]
    %v987 = vld [vmem:[%s931 + $0x1b8] sm:$0xff]
    %v988 = vld [vmem:[%s931 + $0x1c0] sm:$0xff]
    %v989 = vld [vmem:[%s931 + $0x1c8] sm:$0xff]
    %v990 = vld [vmem:[%s931 + $0x1d0] sm:$0xff]
    %v991 = vld [vmem:[%s931 + $0x1d8] sm:$0xff]
    %v992 = vld [vmem:[%s931 + $0x1e0] sm:$0xff]
    %v993 = vld [vmem:[%s931 + $0x1e8] sm:$0xff]
    %v994 = vld [vmem:[%s931 + $0x1f0] sm:$0xff]
    %v995 = vld [vmem:[%s931 + $0x1f8] sm:$0xff]
    %v996 = vld [vmem:[%s931 + $0x200] sm:$0xff]
    %v997 = vld [vmem:[%s931 + $0x208] sm:$0xff]
    %v998 = vld [vmem:[%s931 + $0x210] sm:$0xff]
    %v999 = vld [vmem:[%s931 + $0x218] sm:$0xff]
    %v1000 = vld [vmem:[%s931 + $0x220] sm:$0xff]
    %v1001 = vld [vmem:[%s931 + $0x228] sm:$0xff]
    %v1002 = vld [vmem:[%s931 + $0x230] sm:$0xff]
    %v1003 = vld [vmem:[%s931 + $0x238] sm:$0xff]
    %v1004 = vld [vmem:[%s931 + $0x240] sm:$0xff]
    %v1005 = vld [vmem:[%s931 + $0x248] sm:$0xff]
    %v1006 = vld [vmem:[%s931 + $0x250] sm:$0xff]
    %v1007 = vld [vmem:[%s931 + $0x258] sm:$0xff]
    %v1008 = vld [vmem:[%s931 + $0x260] sm:$0xff]
    %v1009 = vld [vmem:[%s931 + $0x268] sm:$0xff]
    %v1010 = vld [vmem:[%s931 + $0x270] sm:$0xff]
    %v1011 = vld [vmem:[%s931 + $0x278] sm:$0xff]
    %v1012 = vld [vmem:[%s931 + $0x280] sm:$0xff]
    %v1013 = vld [vmem:[%s931 + $0x288] sm:$0xff]
    %v1014 = vld [vmem:[%s931 + $0x290] sm:$0xff]
    %v1015 = vld [vmem:[%s931 + $0x298] sm:$0xff]
    %v1016 = vld [vmem:[%s931 + $0x2a0] sm:$0xff]
    %v1017 = vld [vmem:[%s931 + $0x2a8] sm:$0xff]
    %v1018 = vld [vmem:[%s931 + $0x2b0] sm:$0xff]
    %v1019 = vld [vmem:[%s931 + $0x2b8] sm:$0xff]
    %v1020 = vld [vmem:[%s931 + $0x2c0] sm:$0xff]
    %v1021 = vld [vmem:[%s931 + $0x2c8] sm:$0xff]
    %v1022 = vld [vmem:[%s931 + $0x2d0] sm:$0xff]
    %v1023 = vld [vmem:[%s931 + $0x2d8] sm:$0xff]
    %v1024 = vld [vmem:[%s931 + $0x2e0] sm:$0xff]
    %v1025 = vld [vmem:[%s931 + $0x2e8] sm:$0xff]
    %v1026 = vld [vmem:[%s931 + $0x2f0] sm:$0xff]
    %v1027 = vld [vmem:[%s931 + $0x2f8] sm:$0xff]
    %v1028 = vld [vmem:[%s931 + $0x300] sm:$0xff]
    %v1029 = vld [vmem:[%s931 + $0x308] sm:$0xff]
    %v1030 = vld [vmem:[%s931 + $0x310] sm:$0xff]
    %v1031 = vld [vmem:[%s931 + $0x318] sm:$0xff]
    %v1032 = vld [vmem:[%s931 + $0x320] sm:$0xff]
    %v1033 = vld [vmem:[%s931 + $0x328] sm:$0xff]
    %v1034 = vld [vmem:[%s931 + $0x330] sm:$0xff]
    %v1035 = vld [vmem:[%s931 + $0x338] sm:$0xff]
    %v1036 = vld [vmem:[%s931 + $0x340] sm:$0xff]
    %v1037 = vld [vmem:[%s931 + $0x348] sm:$0xff]
    %v1038 = vld [vmem:[%s931 + $0x350] sm:$0xff]
    %v1039 = vld [vmem:[%s931 + $0x358] sm:$0xff]
    %v1040 = vld [vmem:[%s931 + $0x360] sm:$0xff]
    %v1041 = vld [vmem:[%s931 + $0x368] sm:$0xff]
    %v1042 = vld [vmem:[%s931 + $0x370] sm:$0xff]
    %v1043 = vld [vmem:[%s931 + $0x378] sm:$0xff]
    %v1044 = vld [vmem:[%s931 + $0x380] sm:$0xff]
    %v1045 = vld [vmem:[%s931 + $0x388] sm:$0xff]
    %v1046 = vld [vmem:[%s931 + $0x390] sm:$0xff]
    %v1047 = vld [vmem:[%s931 + $0x398] sm:$0xff]
    %v1048 = vld [vmem:[%s931 + $0x3a0] sm:$0xff]
    %v1049 = vld [vmem:[%s931 + $0x3a8] sm:$0xff]
    %v1050 = vld [vmem:[%s931 + $0x3b0] sm:$0xff]
    %v1051 = vld [vmem:[%s931 + $0x3b8] sm:$0xff]
    %v1052 = vld [vmem:[%s931 + $0x3c0] sm:$0xff]
    %v1053 = vld [vmem:[%s931 + $0x3c8] sm:$0xff]
    %v1054 = vld [vmem:[%s931 + $0x3d0] sm:$0xff]
    %v1055 = vld [vmem:[%s931 + $0x3d8] sm:$0xff]
    %v1056 = vld [vmem:[%s931 + $0x3e0] sm:$0xff]
    %v1057 = vld [vmem:[%s931 + $0x3e8] sm:$0xff]
    %v1058 = vld [vmem:[%s931 + $0x3f0] sm:$0xff]
    %v1059 = vld [vmem:[%s931 + $0x3f8] sm:$0xff]
    %v1060 = vld [vmem:[%s931 + $0x400] sm:$0xff]
    %v1061 = vld [vmem:[%s931 + $0x408] sm:$0xff]
    %v1062 = vld [vmem:[%s931 + $0x410] sm:$0xff]
    %v1063 = vld [vmem:[%s931 + $0x418] sm:$0xff]
    %v1064 = vld [vmem:[%s931 + $0x420] sm:$0xff]
    %v1065 = vld [vmem:[%s931 + $0x428] sm:$0xff]
    %v1066 = vld [vmem:[%s931 + $0x430] sm:$0xff]
    %v1067 = vld [vmem:[%s931 + $0x438] sm:$0xff]
    %v1068 = vld [vmem:[%s931 + $0x440] sm:$0xff]
    %v1069 = vld [vmem:[%s931 + $0x448] sm:$0xff]
    %v1070 = vld [vmem:[%s931 + $0x450] sm:$0xff]
    %v1071 = vld [vmem:[%s931 + $0x458] sm:$0xff]
    %v1072 = vld [vmem:[%s931 + $0x460] sm:$0xff]
    %v1073 = vld [vmem:[%s931 + $0x468] sm:$0xff]
    %v1074 = vld [vmem:[%s931 + $0x470] sm:$0xff]
    %v1075 = vld [vmem:[%s931 + $0x478] sm:$0xff]
    %v1076 = vld [vmem:[%s931 + $0x480] sm:$0xff]
    %v1077 = vld [vmem:[%s931 + $0x488] sm:$0xff]
    %v1078 = vld [vmem:[%s931 + $0x490] sm:$0xff]
    %v1079 = vld [vmem:[%s931 + $0x498] sm:$0xff]
    %v1080 = vld [vmem:[%s931 + $0x4a0] sm:$0xff]
    %v1081 = vld [vmem:[%s931 + $0x4a8] sm:$0xff]
    %v1082 = vld [vmem:[%s931 + $0x4b0] sm:$0xff]
    %v1083 = vld [vmem:[%s931 + $0x4b8] sm:$0xff]
    %v1084 = vld [vmem:[%s931 + $0x4c0] sm:$0xff]
    %v1085 = vld [vmem:[%s931 + $0x4c8] sm:$0xff]
    %v1086 = vld [vmem:[%s931 + $0x4d0] sm:$0xff]
    %v1087 = vld [vmem:[%s931 + $0x4d8] sm:$0xff]
    %v1088 = vld [vmem:[%s931 + $0x4e0] sm:$0xff]
    %v1089 = vld [vmem:[%s931 + $0x4e8] sm:$0xff]
    %v1090 = vld [vmem:[%s931 + $0x4f0] sm:$0xff]
    %v1091 = vld [vmem:[%s931 + $0x4f8] sm:$0xff]
    %v1092 = vld [vmem:[%s931 + $0x500] sm:$0xff]
    %v1093 = vld [vmem:[%s931 + $0x508] sm:$0xff]
    %v1094 = vld [vmem:[%s931 + $0x510] sm:$0xff]
    %v1095 = vld [vmem:[%s931 + $0x518] sm:$0xff]
    %v1096 = vld [vmem:[%s931 + $0x520] sm:$0xff]
    %v1097 = vld [vmem:[%s931 + $0x528] sm:$0xff]
    %v1098 = vld [vmem:[%s931 + $0x530] sm:$0xff]
    %v1099 = vld [vmem:[%s931 + $0x538] sm:$0xff]
    %v1100 = vld [vmem:[%s931 + $0x540] sm:$0xff]
    %v1101 = vld [vmem:[%s931 + $0x548] sm:$0xff]
    %v1102 = vld [vmem:[%s931 + $0x550] sm:$0xff]
    %v1103 = vld [vmem:[%s931 + $0x558] sm:$0xff]
    %v1104 = vld [vmem:[%s931 + $0x560] sm:$0xff]
    %v1105 = vld [vmem:[%s931 + $0x568] sm:$0xff]
    %v1106 = vld [vmem:[%s931 + $0x570] sm:$0xff]
    %v1107 = vld [vmem:[%s931 + $0x578] sm:$0xff]
    %v1108 = vld [vmem:[%s931 + $0x580] sm:$0xff]
    %v1109 = vld [vmem:[%s931 + $0x588] sm:$0xff]
    %v1110 = vld [vmem:[%s931 + $0x590] sm:$0xff]
    %v1111 = vld [vmem:[%s931 + $0x598] sm:$0xff]
    %v1112 = vld [vmem:[%s931 + $0x5a0] sm:$0xff]
    %v1113 = vld [vmem:[%s931 + $0x5a8] sm:$0xff]
    %v1114 = vld [vmem:[%s931 + $0x5b0] sm:$0x7f]
    %v1115 = vld [vmem:[%s931 + $0x5b8] sm:$0x7f]
    %s1116 = scalar_lea.vmem [#allocation7], 2
    %v1117 = vld [vmem:[%s1116] sm:$0x3]
    %v1119 = vlaneseq
    %v1120 = vshrl.u32 %v1119, 7
    %v1121 = vsub.s32 0, %v1120
    %v1122 = vrot.slane %v1117, %v1121
    %v1123 = vlaneseq
    %v1124 = vshrl.u32 %v1123, 7
    %v1125 = vsub.s32 1, %v1124
    %v1126 = vrot.slane %v1117, %v1125
    %v1130 = vsel %vm707, %v1114, 0
    %v1133 = vsel %vm707, %v1115, 0
    %1135 = vmatprep.subr.mxu0 %v963
    %1136 = vmatpush1.msra.mxu0 %v962
    %1137 = vmatprep.subr.mxu0 %v961
    %1138 = vmatpush1.msra.mxu0 %v960
    %1139 = vmatprep.subr.mxu0 %v959
    %1140 = vmatpush1.msra.mxu0 %v958
    %1141 = vmatprep.subr.mxu0 %v957
    %1142 = vmatpush1.msra.mxu0 %v956
    %1143 = vmatprep.subr.mxu0 %v955
    %1144 = vmatpush1.msra.mxu0 %v954
    %1145 = vmatprep.subr.mxu0 %v953
    %1146 = vmatpush1.msra.mxu0 %v952
    %1147 = vmatprep.subr.mxu0 %v951
    %1148 = vmatpush1.msra.mxu0 %v950
    %1149 = vmatprep.subr.mxu0 %v949
    %1150 = vmatpush1.msra.mxu0 %v948
    %1151 = vmatprep.subr.mxu0 %v947
    %1152 = vmatpush1.msra.mxu0 %v946
    %1153 = vmatprep.subr.mxu0 %v945
    %1154 = vmatpush1.msra.mxu0 %v944
    %1155 = vmatprep.subr.mxu0 %v943
    %1156 = vmatpush1.msra.mxu0 %v942
    %1157 = vmatprep.subr.mxu0 %v941
    %1158 = vmatpush1.msra.mxu0 %v940
    %1159 = vmatprep.subr.mxu0 %v939
    %1160 = vmatpush1.msra.mxu0 %v938
    %1161 = vmatprep.subr.mxu0 %v937
    %1162 = vmatpush1.msra.mxu0 %v936
    %1163 = vmatprep.subr.mxu0 %v935
    %1164 = vmatpush1.msra.mxu0 %v934
    %1165 = vmatprep.subr.mxu0 %v933
    %1166 = vmatpush1.msra.mxu0 %v932
    %1167 = vmatprep.subr.mxu0 %v995
    %1168 = vmatpush2.msra.mxu0 %v994
    %1169 = vmatprep.subr.mxu0 %v993
    %1170 = vmatpush2.msra.mxu0 %v992
    %1171 = vmatprep.subr.mxu0 %v991
    %1172 = vmatpush2.msra.mxu0 %v990
    %1173 = vmatprep.subr.mxu0 %v989
    %1174 = vmatpush2.msra.mxu0 %v988
    %1175 = vmatprep.subr.mxu0 %v987
    %1176 = vmatpush2.msra.mxu0 %v986
    %1177 = vmatprep.subr.mxu0 %v985
    %1178 = vmatpush2.msra.mxu0 %v984
    %1179 = vmatprep.subr.mxu0 %v983
    %1180 = vmatpush2.msra.mxu0 %v982
    %1181 = vmatprep.subr.mxu0 %v981
    %1182 = vmatpush2.msra.mxu0 %v980
    %1183 = vmatprep.subr.mxu0 %v979
    %1184 = vmatpush2.msra.mxu0 %v978
    %1185 = vmatprep.subr.mxu0 %v977
    %1186 = vmatpush2.msra.mxu0 %v976
    %1187 = vmatprep.subr.mxu0 %v975
    %1188 = vmatpush2.msra.mxu0 %v974
    %1189 = vmatprep.subr.mxu0 %v973
    %1190 = vmatpush2.msra.mxu0 %v972
    %1191 = vmatprep.subr.mxu0 %v971
    %1192 = vmatpush2.msra.mxu0 %v970
    %1193 = vmatprep.subr.mxu0 %v969
    %1194 = vmatpush2.msra.mxu0 %v968
    %1195 = vmatprep.subr.mxu0 %v967
    %1196 = vmatpush2.msra.mxu0 %v966
    %1197 = vmatprep.subr.mxu0 %v965
    %1198 = vmatpush2.msra.mxu0 %v964
    %1199 = vmatprep.mubr.f32.mxu0 %v502
    %1200 = vmatmul.mubr.f32.gmra.mxu0 %v501
    %v1201 = vpop.f32.mrf.mxu0
    %v1202 = vadd.f32 %v1122, %v1201
    %v1203 = vpop.f32.mrf.mxu0
    %v1204 = vadd.f32 %v1126, %v1203
    %1205 = vdwg.mxu0
    %1206 = vmatprep.subr.mxu0 %v1027
    %1207 = vmatpush1.msra.mxu0 %v1026
    %1208 = vmatprep.subr.mxu0 %v1025
    %1209 = vmatpush1.msra.mxu0 %v1024
    %1210 = vmatprep.subr.mxu0 %v1023
    %1211 = vmatpush1.msra.mxu0 %v1022
    %1212 = vmatprep.subr.mxu0 %v1021
    %1213 = vmatpush1.msra.mxu0 %v1020
    %1214 = vmatprep.subr.mxu0 %v1019
    %1215 = vmatpush1.msra.mxu0 %v1018
    %1216 = vmatprep.subr.mxu0 %v1017
    %1217 = vmatpush1.msra.mxu0 %v1016
    %1218 = vmatprep.subr.mxu0 %v1015
    %1219 = vmatpush1.msra.mxu0 %v1014
    %1220 = vmatprep.subr.mxu0 %v1013
    %1221 = vmatpush1.msra.mxu0 %v1012
    %1222 = vmatprep.subr.mxu0 %v1011
    %1223 = vmatpush1.msra.mxu0 %v1010
    %1224 = vmatprep.subr.mxu0 %v1009
    %1225 = vmatpush1.msra.mxu0 %v1008
    %1226 = vmatprep.subr.mxu0 %v1007
    %1227 = vmatpush1.msra.mxu0 %v1006
    %1228 = vmatprep.subr.mxu0 %v1005
    %1229 = vmatpush1.msra.mxu0 %v1004
    %1230 = vmatprep.subr.mxu0 %v1003
    %1231 = vmatpush1.msra.mxu0 %v1002
    %1232 = vmatprep.subr.mxu0 %v1001
    %1233 = vmatpush1.msra.mxu0 %v1000
    %1234 = vmatprep.subr.mxu0 %v999
    %1235 = vmatpush1.msra.mxu0 %v998
    %1236 = vmatprep.subr.mxu0 %v997
    %1237 = vmatpush1.msra.mxu0 %v996
    %1238 = vmatprep.subr.mxu0 %v1059
    %1239 = vmatpush2.msra.mxu0 %v1058
    %1240 = vmatprep.subr.mxu0 %v1057
    %1241 = vmatpush2.msra.mxu0 %v1056
    %1242 = vmatprep.subr.mxu0 %v1055
    %1243 = vmatpush2.msra.mxu0 %v1054
    %1244 = vmatprep.subr.mxu0 %v1053
    %1245 = vmatpush2.msra.mxu0 %v1052
    %1246 = vmatprep.subr.mxu0 %v1051
    %1247 = vmatpush2.msra.mxu0 %v1050
    %1248 = vmatprep.subr.mxu0 %v1049
    %1249 = vmatpush2.msra.mxu0 %v1048
    %1250 = vmatprep.subr.mxu0 %v1047
    %1251 = vmatpush2.msra.mxu0 %v1046
    %1252 = vmatprep.subr.mxu0 %v1045
    %1253 = vmatpush2.msra.mxu0 %v1044
    %1254 = vmatprep.subr.mxu0 %v1043
    %1255 = vmatpush2.msra.mxu0 %v1042
    %1256 = vmatprep.subr.mxu0 %v1041
    %1257 = vmatpush2.msra.mxu0 %v1040
    %1258 = vmatprep.subr.mxu0 %v1039
    %1259 = vmatpush2.msra.mxu0 %v1038
    %1260 = vmatprep.subr.mxu0 %v1037
    %1261 = vmatpush2.msra.mxu0 %v1036
    %1262 = vmatprep.subr.mxu0 %v1035
    %1263 = vmatpush2.msra.mxu0 %v1034
    %1264 = vmatprep.subr.mxu0 %v1033
    %1265 = vmatpush2.msra.mxu0 %v1032
    %1266 = vmatprep.subr.mxu0 %v1031
    %1267 = vmatpush2.msra.mxu0 %v1030
    %1268 = vmatprep.subr.mxu0 %v1029
    %1269 = vmatpush2.msra.mxu0 %v1028
    %1270 = vmatprep.mubr.f32.mxu0 %v504
    %1271 = vmatmul.mubr.f32.gmra.mxu0 %v503
    %v1272 = vpop.f32.mrf.mxu0
    %v1273 = vadd.f32 %v1202, %v1272
    %v1274 = vpop.f32.mrf.mxu0
    %v1275 = vadd.f32 %v1204, %v1274
    %1276 = vdwg.mxu0
    %1277 = vmatprep.subr.mxu0 %v1091
    %1278 = vmatpush1.msra.mxu0 %v1090
    %1279 = vmatprep.subr.mxu0 %v1089
    %1280 = vmatpush1.msra.mxu0 %v1088
    %1281 = vmatprep.subr.mxu0 %v1087
    %1282 = vmatpush1.msra.mxu0 %v1086
    %1283 = vmatprep.subr.mxu0 %v1085
    %1284 = vmatpush1.msra.mxu0 %v1084
    %1285 = vmatprep.subr.mxu0 %v1083
    %1286 = vmatpush1.msra.mxu0 %v1082
    %1287 = vmatprep.subr.mxu0 %v1081
    %1288 = vmatpush1.msra.mxu0 %v1080
    %1289 = vmatprep.subr.mxu0 %v1079
    %1290 = vmatpush1.msra.mxu0 %v1078
    %1291 = vmatprep.subr.mxu0 %v1077
    %1292 = vmatpush1.msra.mxu0 %v1076
    %1293 = vmatprep.subr.mxu0 %v1075
    %1294 = vmatpush1.msra.mxu0 %v1074
    %1295 = vmatprep.subr.mxu0 %v1073
    %1296 = vmatpush1.msra.mxu0 %v1072
    %1297 = vmatprep.subr.mxu0 %v1071
    %1298 = vmatpush1.msra.mxu0 %v1070
    %1299 = vmatprep.subr.mxu0 %v1069
    %1300 = vmatpush1.msra.mxu0 %v1068
    %1301 = vmatprep.subr.mxu0 %v1067
    %1302 = vmatpush1.msra.mxu0 %v1066
    %1303 = vmatprep.subr.mxu0 %v1065
    %1304 = vmatpush1.msra.mxu0 %v1064
    %1305 = vmatprep.subr.mxu0 %v1063
    %1306 = vmatpush1.msra.mxu0 %v1062
    %1307 = vmatprep.subr.mxu0 %v1061
    %1308 = vmatpush1.msra.mxu0 %v1060
    %1309 = vmatprep.subr.mxu0 0.0
    %1310 = vmatpush2.msra.mxu0 0.0
    %1311 = vmatprep.subr.mxu0 0.0
    %1312 = vmatpush2.msra.mxu0 0.0
    %1313 = vmatprep.subr.mxu0 0.0
    %1314 = vmatpush2.msra.mxu0 0.0
    %1315 = vmatprep.subr.mxu0 0.0
    %1316 = vmatpush2.msra.mxu0 0.0
    %1317 = vmatprep.subr.mxu0 %v1133
    %1318 = vmatpush2.msra.mxu0 %v1130
    %1319 = vmatprep.subr.mxu0 %v1113
    %1320 = vmatpush2.msra.mxu0 %v1112
    %1321 = vmatprep.subr.mxu0 %v1111
    %1322 = vmatpush2.msra.mxu0 %v1110
    %1323 = vmatprep.subr.mxu0 %v1109
    %1324 = vmatpush2.msra.mxu0 %v1108
    %1325 = vmatprep.subr.mxu0 %v1107
    %1326 = vmatpush2.msra.mxu0 %v1106
    %1327 = vmatprep.subr.mxu0 %v1105
    %1328 = vmatpush2.msra.mxu0 %v1104
    %1329 = vmatprep.subr.mxu0 %v1103
    %1330 = vmatpush2.msra.mxu0 %v1102
    %1331 = vmatprep.subr.mxu0 %v1101
    %1332 = vmatpush2.msra.mxu0 %v1100
    %1333 = vmatprep.subr.mxu0 %v1099
    %1334 = vmatpush2.msra.mxu0 %v1098
    %1335 = vmatprep.subr.mxu0 %v1097
    %1336 = vmatpush2.msra.mxu0 %v1096
    %1337 = vmatprep.subr.mxu0 %v1095
    %1338 = vmatpush2.msra.mxu0 %v1094
    %1339 = vmatprep.subr.mxu0 %v1093
    %1340 = vmatpush2.msra.mxu0 %v1092
    %1341 = vmatprep.mubr.f32.mxu0 %v705
    %1342 = vmatmul.mubr.f32.gmra.mxu0 %v505
    %v1343 = vpop.f32.mrf.mxu0
    %v1344 = vadd.f32 %v1273, %v1343
    %v1345 = vpop.f32.mrf.mxu0
    %v1346 = vadd.f32 %v1275, %v1345
    %1347 = vdwg.mxu0
    %v1348 = vmax.f32 %v1344, 0.0
    %v1349 = vmax.f32 %v1346, 0.0
    %v1350 = vadd.f32 %v929, %v1348
    %v1351 = vadd.f32 %v930, %v1349
    %s1352 = scalar_lea.vmem [#allocation6], 2944
    %v1353 = vld [vmem:[%s1352] sm:$0xff]
    %v1354 = vld [vmem:[%s1352 + $0x8] sm:$0xff]
    %v1355 = vld [vmem:[%s1352 + $0x10] sm:$0xff]
    %v1356 = vld [vmem:[%s1352 + $0x18] sm:$0xff]
    %v1357 = vld [vmem:[%s1352 + $0x20] sm:$0xff]
    %v1358 = vld [vmem:[%s1352 + $0x28] sm:$0xff]
    %v1359 = vld [vmem:[%s1352 + $0x30] sm:$0xff]
    %v1360 = vld [vmem:[%s1352 + $0x38] sm:$0xff]
    %v1361 = vld [vmem:[%s1352 + $0x40] sm:$0xff]
    %v1362 = vld [vmem:[%s1352 + $0x48] sm:$0xff]
    %v1363 = vld [vmem:[%s1352 + $0x50] sm:$0xff]
    %v1364 = vld [vmem:[%s1352 + $0x58] sm:$0xff]
    %v1365 = vld [vmem:[%s1352 + $0x60] sm:$0xff]
    %v1366 = vld [vmem:[%s1352 + $0x68] sm:$0xff]
    %v1367 = vld [vmem:[%s1352 + $0x70] sm:$0xff]
    %v1368 = vld [vmem:[%s1352 + $0x78] sm:$0xff]
    %v1369 = vld [vmem:[%s1352 + $0x80] sm:$0xff]
    %v1370 = vld [vmem:[%s1352 + $0x88] sm:$0xff]
    %v1371 = vld [vmem:[%s1352 + $0x90] sm:$0xff]
    %v1372 = vld [vmem:[%s1352 + $0x98] sm:$0xff]
    %v1373 = vld [vmem:[%s1352 + $0xa0] sm:$0xff]
    %v1374 = vld [vmem:[%s1352 + $0xa8] sm:$0xff]
    %v1375 = vld [vmem:[%s1352 + $0xb0] sm:$0xff]
    %v1376 = vld [vmem:[%s1352 + $0xb8] sm:$0xff]
    %v1377 = vld [vmem:[%s1352 + $0xc0] sm:$0xff]
    %v1378 = vld [vmem:[%s1352 + $0xc8] sm:$0xff]
    %v1379 = vld [vmem:[%s1352 + $0xd0] sm:$0xff]
    %v1380 = vld [vmem:[%s1352 + $0xd8] sm:$0xff]
    %v1381 = vld [vmem:[%s1352 + $0xe0] sm:$0xff]
    %v1382 = vld [vmem:[%s1352 + $0xe8] sm:$0xff]
    %v1383 = vld [vmem:[%s1352 + $0xf0] sm:$0xff]
    %v1384 = vld [vmem:[%s1352 + $0xf8] sm:$0xff]
    %v1385 = vld [vmem:[%s1352 + $0x100] sm:$0xff]
    %v1386 = vld [vmem:[%s1352 + $0x108] sm:$0xff]
    %v1387 = vld [vmem:[%s1352 + $0x110] sm:$0xff]
    %v1388 = vld [vmem:[%s1352 + $0x118] sm:$0xff]
    %v1389 = vld [vmem:[%s1352 + $0x120] sm:$0xff]
    %v1390 = vld [vmem:[%s1352 + $0x128] sm:$0xff]
    %v1391 = vld [vmem:[%s1352 + $0x130] sm:$0xff]
    %v1392 = vld [vmem:[%s1352 + $0x138] sm:$0xff]
    %v1393 = vld [vmem:[%s1352 + $0x140] sm:$0xff]
    %v1394 = vld [vmem:[%s1352 + $0x148] sm:$0xff]
    %v1395 = vld [vmem:[%s1352 + $0x150] sm:$0xff]
    %v1396 = vld [vmem:[%s1352 + $0x158] sm:$0xff]
    %v1397 = vld [vmem:[%s1352 + $0x160] sm:$0xff]
    %v1398 = vld [vmem:[%s1352 + $0x168] sm:$0xff]
    %v1399 = vld [vmem:[%s1352 + $0x170] sm:$0xff]
    %v1400 = vld [vmem:[%s1352 + $0x178] sm:$0xff]
    %v1401 = vld [vmem:[%s1352 + $0x180] sm:$0xff]
    %v1402 = vld [vmem:[%s1352 + $0x188] sm:$0xff]
    %v1403 = vld [vmem:[%s1352 + $0x190] sm:$0xff]
    %v1404 = vld [vmem:[%s1352 + $0x198] sm:$0xff]
    %v1405 = vld [vmem:[%s1352 + $0x1a0] sm:$0xff]
    %v1406 = vld [vmem:[%s1352 + $0x1a8] sm:$0xff]
    %v1407 = vld [vmem:[%s1352 + $0x1b0] sm:$0xff]
    %v1408 = vld [vmem:[%s1352 + $0x1b8] sm:$0xff]
    %v1409 = vld [vmem:[%s1352 + $0x1c0] sm:$0xff]
    %v1410 = vld [vmem:[%s1352 + $0x1c8] sm:$0xff]
    %v1411 = vld [vmem:[%s1352 + $0x1d0] sm:$0xff]
    %v1412 = vld [vmem:[%s1352 + $0x1d8] sm:$0xff]
    %v1413 = vld [vmem:[%s1352 + $0x1e0] sm:$0xff]
    %v1414 = vld [vmem:[%s1352 + $0x1e8] sm:$0xff]
    %v1415 = vld [vmem:[%s1352 + $0x1f0] sm:$0xff]
    %v1416 = vld [vmem:[%s1352 + $0x1f8] sm:$0xff]
    %v1417 = vld [vmem:[%s1352 + $0x200] sm:$0xff]
    %v1418 = vld [vmem:[%s1352 + $0x208] sm:$0xff]
    %v1419 = vld [vmem:[%s1352 + $0x210] sm:$0xff]
    %v1420 = vld [vmem:[%s1352 + $0x218] sm:$0xff]
    %v1421 = vld [vmem:[%s1352 + $0x220] sm:$0xff]
    %v1422 = vld [vmem:[%s1352 + $0x228] sm:$0xff]
    %v1423 = vld [vmem:[%s1352 + $0x230] sm:$0xff]
    %v1424 = vld [vmem:[%s1352 + $0x238] sm:$0xff]
    %v1425 = vld [vmem:[%s1352 + $0x240] sm:$0xff]
    %v1426 = vld [vmem:[%s1352 + $0x248] sm:$0xff]
    %v1427 = vld [vmem:[%s1352 + $0x250] sm:$0xff]
    %v1428 = vld [vmem:[%s1352 + $0x258] sm:$0xff]
    %v1429 = vld [vmem:[%s1352 + $0x260] sm:$0xff]
    %v1430 = vld [vmem:[%s1352 + $0x268] sm:$0xff]
    %v1431 = vld [vmem:[%s1352 + $0x270] sm:$0xff]
    %v1432 = vld [vmem:[%s1352 + $0x278] sm:$0xff]
    %v1433 = vld [vmem:[%s1352 + $0x280] sm:$0xff]
    %v1434 = vld [vmem:[%s1352 + $0x288] sm:$0xff]
    %v1435 = vld [vmem:[%s1352 + $0x290] sm:$0xff]
    %v1436 = vld [vmem:[%s1352 + $0x298] sm:$0xff]
    %v1437 = vld [vmem:[%s1352 + $0x2a0] sm:$0xff]
    %v1438 = vld [vmem:[%s1352 + $0x2a8] sm:$0xff]
    %v1439 = vld [vmem:[%s1352 + $0x2b0] sm:$0xff]
    %v1440 = vld [vmem:[%s1352 + $0x2b8] sm:$0xff]
    %v1441 = vld [vmem:[%s1352 + $0x2c0] sm:$0xff]
    %v1442 = vld [vmem:[%s1352 + $0x2c8] sm:$0xff]
    %v1443 = vld [vmem:[%s1352 + $0x2d0] sm:$0xff]
    %v1444 = vld [vmem:[%s1352 + $0x2d8] sm:$0xff]
    %v1445 = vld [vmem:[%s1352 + $0x2e0] sm:$0xff]
    %v1446 = vld [vmem:[%s1352 + $0x2e8] sm:$0xff]
    %v1447 = vld [vmem:[%s1352 + $0x2f0] sm:$0xff]
    %v1448 = vld [vmem:[%s1352 + $0x2f8] sm:$0xff]
    %v1449 = vld [vmem:[%s1352 + $0x300] sm:$0xff]
    %v1450 = vld [vmem:[%s1352 + $0x308] sm:$0xff]
    %v1451 = vld [vmem:[%s1352 + $0x310] sm:$0xff]
    %v1452 = vld [vmem:[%s1352 + $0x318] sm:$0xff]
    %v1453 = vld [vmem:[%s1352 + $0x320] sm:$0xff]
    %v1454 = vld [vmem:[%s1352 + $0x328] sm:$0xff]
    %v1455 = vld [vmem:[%s1352 + $0x330] sm:$0xff]
    %v1456 = vld [vmem:[%s1352 + $0x338] sm:$0xff]
    %v1457 = vld [vmem:[%s1352 + $0x340] sm:$0xff]
    %v1458 = vld [vmem:[%s1352 + $0x348] sm:$0xff]
    %v1459 = vld [vmem:[%s1352 + $0x350] sm:$0xff]
    %v1460 = vld [vmem:[%s1352 + $0x358] sm:$0xff]
    %v1461 = vld [vmem:[%s1352 + $0x360] sm:$0xff]
    %v1462 = vld [vmem:[%s1352 + $0x368] sm:$0xff]
    %v1463 = vld [vmem:[%s1352 + $0x370] sm:$0xff]
    %v1464 = vld [vmem:[%s1352 + $0x378] sm:$0xff]
    %v1465 = vld [vmem:[%s1352 + $0x380] sm:$0xff]
    %v1466 = vld [vmem:[%s1352 + $0x388] sm:$0xff]
    %v1467 = vld [vmem:[%s1352 + $0x390] sm:$0xff]
    %v1468 = vld [vmem:[%s1352 + $0x398] sm:$0xff]
    %v1469 = vld [vmem:[%s1352 + $0x3a0] sm:$0xff]
    %v1470 = vld [vmem:[%s1352 + $0x3a8] sm:$0xff]
    %v1471 = vld [vmem:[%s1352 + $0x3b0] sm:$0xff]
    %v1472 = vld [vmem:[%s1352 + $0x3b8] sm:$0xff]
    %v1473 = vld [vmem:[%s1352 + $0x3c0] sm:$0xff]
    %v1474 = vld [vmem:[%s1352 + $0x3c8] sm:$0xff]
    %v1475 = vld [vmem:[%s1352 + $0x3d0] sm:$0xff]
    %v1476 = vld [vmem:[%s1352 + $0x3d8] sm:$0xff]
    %v1477 = vld [vmem:[%s1352 + $0x3e0] sm:$0xff]
    %v1478 = vld [vmem:[%s1352 + $0x3e8] sm:$0xff]
    %v1479 = vld [vmem:[%s1352 + $0x3f0] sm:$0xff]
    %v1480 = vld [vmem:[%s1352 + $0x3f8] sm:$0xff]
    %v1481 = vld [vmem:[%s1352 + $0x400] sm:$0xff]
    %v1482 = vld [vmem:[%s1352 + $0x408] sm:$0xff]
    %v1483 = vld [vmem:[%s1352 + $0x410] sm:$0xff]
    %v1484 = vld [vmem:[%s1352 + $0x418] sm:$0xff]
    %v1485 = vld [vmem:[%s1352 + $0x420] sm:$0xff]
    %v1486 = vld [vmem:[%s1352 + $0x428] sm:$0xff]
    %v1487 = vld [vmem:[%s1352 + $0x430] sm:$0xff]
    %v1488 = vld [vmem:[%s1352 + $0x438] sm:$0xff]
    %v1489 = vld [vmem:[%s1352 + $0x440] sm:$0xff]
    %v1490 = vld [vmem:[%s1352 + $0x448] sm:$0xff]
    %v1491 = vld [vmem:[%s1352 + $0x450] sm:$0xff]
    %v1492 = vld [vmem:[%s1352 + $0x458] sm:$0xff]
    %v1493 = vld [vmem:[%s1352 + $0x460] sm:$0xff]
    %v1494 = vld [vmem:[%s1352 + $0x468] sm:$0xff]
    %v1495 = vld [vmem:[%s1352 + $0x470] sm:$0xff]
    %v1496 = vld [vmem:[%s1352 + $0x478] sm:$0xff]
    %v1497 = vld [vmem:[%s1352 + $0x480] sm:$0xff]
    %v1498 = vld [vmem:[%s1352 + $0x488] sm:$0xff]
    %v1499 = vld [vmem:[%s1352 + $0x490] sm:$0xff]
    %v1500 = vld [vmem:[%s1352 + $0x498] sm:$0xff]
    %v1501 = vld [vmem:[%s1352 + $0x4a0] sm:$0xff]
    %v1502 = vld [vmem:[%s1352 + $0x4a8] sm:$0xff]
    %v1503 = vld [vmem:[%s1352 + $0x4b0] sm:$0xff]
    %v1504 = vld [vmem:[%s1352 + $0x4b8] sm:$0xff]
    %v1505 = vld [vmem:[%s1352 + $0x4c0] sm:$0xff]
    %v1506 = vld [vmem:[%s1352 + $0x4c8] sm:$0xff]
    %v1507 = vld [vmem:[%s1352 + $0x4d0] sm:$0xff]
    %v1508 = vld [vmem:[%s1352 + $0x4d8] sm:$0xff]
    %v1509 = vld [vmem:[%s1352 + $0x4e0] sm:$0xff]
    %v1510 = vld [vmem:[%s1352 + $0x4e8] sm:$0xff]
    %v1511 = vld [vmem:[%s1352 + $0x4f0] sm:$0xff]
    %v1512 = vld [vmem:[%s1352 + $0x4f8] sm:$0xff]
    %v1513 = vld [vmem:[%s1352 + $0x500] sm:$0xff]
    %v1514 = vld [vmem:[%s1352 + $0x508] sm:$0xff]
    %v1515 = vld [vmem:[%s1352 + $0x510] sm:$0xff]
    %v1516 = vld [vmem:[%s1352 + $0x518] sm:$0xff]
    %v1517 = vld [vmem:[%s1352 + $0x520] sm:$0xff]
    %v1518 = vld [vmem:[%s1352 + $0x528] sm:$0xff]
    %v1519 = vld [vmem:[%s1352 + $0x530] sm:$0xff]
    %v1520 = vld [vmem:[%s1352 + $0x538] sm:$0xff]
    %v1521 = vld [vmem:[%s1352 + $0x540] sm:$0xff]
    %v1522 = vld [vmem:[%s1352 + $0x548] sm:$0xff]
    %v1523 = vld [vmem:[%s1352 + $0x550] sm:$0xff]
    %v1524 = vld [vmem:[%s1352 + $0x558] sm:$0xff]
    %v1525 = vld [vmem:[%s1352 + $0x560] sm:$0xff]
    %v1526 = vld [vmem:[%s1352 + $0x568] sm:$0xff]
    %v1527 = vld [vmem:[%s1352 + $0x570] sm:$0xff]
    %v1528 = vld [vmem:[%s1352 + $0x578] sm:$0xff]
    %v1529 = vld [vmem:[%s1352 + $0x580] sm:$0xff]
    %v1530 = vld [vmem:[%s1352 + $0x588] sm:$0xff]
    %v1531 = vld [vmem:[%s1352 + $0x590] sm:$0xff]
    %v1532 = vld [vmem:[%s1352 + $0x598] sm:$0xff]
    %v1533 = vld [vmem:[%s1352 + $0x5a0] sm:$0xff]
    %v1534 = vld [vmem:[%s1352 + $0x5a8] sm:$0xff]
    %v1535 = vld [vmem:[%s1352 + $0x5b0] sm:$0x7f]
    %v1536 = vld [vmem:[%s1352 + $0x5b8] sm:$0x7f]
    %s1537 = scalar_lea.vmem [#allocation7], 4
    %v1538 = vld [vmem:[%s1537] sm:$0x3]
    %v1540 = vlaneseq
    %v1541 = vshrl.u32 %v1540, 7
    %v1542 = vsub.s32 0, %v1541
    %v1543 = vrot.slane %v1538, %v1542
    %v1544 = vlaneseq
    %v1545 = vshrl.u32 %v1544, 7
    %v1546 = vsub.s32 1, %v1545
    %v1547 = vrot.slane %v1538, %v1546
    %v1551 = vsel %vm707, %v1535, 0
    %v1554 = vsel %vm707, %v1536, 0
    %1556 = vmatprep.subr.mxu0 %v1384
    %1557 = vmatpush1.msra.mxu0 %v1383
    %1558 = vmatprep.subr.mxu0 %v1382
    %1559 = vmatpush1.msra.mxu0 %v1381
    %1560 = vmatprep.subr.mxu0 %v1380
    %1561 = vmatpush1.msra.mxu0 %v1379
    %1562 = vmatprep.subr.mxu0 %v1378
    %1563 = vmatpush1.msra.mxu0 %v1377
    %1564 = vmatprep.subr.mxu0 %v1376
    %1565 = vmatpush1.msra.mxu0 %v1375
    %1566 = vmatprep.subr.mxu0 %v1374
    %1567 = vmatpush1.msra.mxu0 %v1373
    %1568 = vmatprep.subr.mxu0 %v1372
    %1569 = vmatpush1.msra.mxu0 %v1371
    %1570 = vmatprep.subr.mxu0 %v1370
    %1571 = vmatpush1.msra.mxu0 %v1369
    %1572 = vmatprep.subr.mxu0 %v1368
    %1573 = vmatpush1.msra.mxu0 %v1367
    %1574 = vmatprep.subr.mxu0 %v1366
    %1575 = vmatpush1.msra.mxu0 %v1365
    %1576 = vmatprep.subr.mxu0 %v1364
    %1577 = vmatpush1.msra.mxu0 %v1363
    %1578 = vmatprep.subr.mxu0 %v1362
    %1579 = vmatpush1.msra.mxu0 %v1361
    %1580 = vmatprep.subr.mxu0 %v1360
    %1581 = vmatpush1.msra.mxu0 %v1359
    %1582 = vmatprep.subr.mxu0 %v1358
    %1583 = vmatpush1.msra.mxu0 %v1357
    %1584 = vmatprep.subr.mxu0 %v1356
    %1585 = vmatpush1.msra.mxu0 %v1355
    %1586 = vmatprep.subr.mxu0 %v1354
    %1587 = vmatpush1.msra.mxu0 %v1353
    %1588 = vmatprep.subr.mxu0 %v1416
    %1589 = vmatpush2.msra.mxu0 %v1415
    %1590 = vmatprep.subr.mxu0 %v1414
    %1591 = vmatpush2.msra.mxu0 %v1413
    %1592 = vmatprep.subr.mxu0 %v1412
    %1593 = vmatpush2.msra.mxu0 %v1411
    %1594 = vmatprep.subr.mxu0 %v1410
    %1595 = vmatpush2.msra.mxu0 %v1409
    %1596 = vmatprep.subr.mxu0 %v1408
    %1597 = vmatpush2.msra.mxu0 %v1407
    %1598 = vmatprep.subr.mxu0 %v1406
    %1599 = vmatpush2.msra.mxu0 %v1405
    %1600 = vmatprep.subr.mxu0 %v1404
    %1601 = vmatpush2.msra.mxu0 %v1403
    %1602 = vmatprep.subr.mxu0 %v1402
    %1603 = vmatpush2.msra.mxu0 %v1401
    %1604 = vmatprep.subr.mxu0 %v1400
    %1605 = vmatpush2.msra.mxu0 %v1399
    %1606 = vmatprep.subr.mxu0 %v1398
    %1607 = vmatpush2.msra.mxu0 %v1397
    %1608 = vmatprep.subr.mxu0 %v1396
    %1609 = vmatpush2.msra.mxu0 %v1395
    %1610 = vmatprep.subr.mxu0 %v1394
    %1611 = vmatpush2.msra.mxu0 %v1393
    %1612 = vmatprep.subr.mxu0 %v1392
    %1613 = vmatpush2.msra.mxu0 %v1391
    %1614 = vmatprep.subr.mxu0 %v1390
    %1615 = vmatpush2.msra.mxu0 %v1389
    %1616 = vmatprep.subr.mxu0 %v1388
    %1617 = vmatpush2.msra.mxu0 %v1387
    %1618 = vmatprep.subr.mxu0 %v1386
    %1619 = vmatpush2.msra.mxu0 %v1385
    %1620 = vmatprep.mubr.f32.mxu0 %v502
    %1621 = vmatmul.mubr.f32.gmra.mxu0 %v501
    %v1622 = vpop.f32.mrf.mxu0
    %v1623 = vadd.f32 %v1543, %v1622
    %v1624 = vpop.f32.mrf.mxu0
    %v1625 = vadd.f32 %v1547, %v1624
    %1626 = vdwg.mxu0
    %1627 = vmatprep.subr.mxu0 %v1448
    %1628 = vmatpush1.msra.mxu0 %v1447
    %1629 = vmatprep.subr.mxu0 %v1446
    %1630 = vmatpush1.msra.mxu0 %v1445
    %1631 = vmatprep.subr.mxu0 %v1444
    %1632 = vmatpush1.msra.mxu0 %v1443
    %1633 = vmatprep.subr.mxu0 %v1442
    %1634 = vmatpush1.msra.mxu0 %v1441
    %1635 = vmatprep.subr.mxu0 %v1440
    %1636 = vmatpush1.msra.mxu0 %v1439
    %1637 = vmatprep.subr.mxu0 %v1438
    %1638 = vmatpush1.msra.mxu0 %v1437
    %1639 = vmatprep.subr.mxu0 %v1436
    %1640 = vmatpush1.msra.mxu0 %v1435
    %1641 = vmatprep.subr.mxu0 %v1434
    %1642 = vmatpush1.msra.mxu0 %v1433
    %1643 = vmatprep.subr.mxu0 %v1432
    %1644 = vmatpush1.msra.mxu0 %v1431
    %1645 = vmatprep.subr.mxu0 %v1430
    %1646 = vmatpush1.msra.mxu0 %v1429
    %1647 = vmatprep.subr.mxu0 %v1428
    %1648 = vmatpush1.msra.mxu0 %v1427
    %1649 = vmatprep.subr.mxu0 %v1426
    %1650 = vmatpush1.msra.mxu0 %v1425
    %1651 = vmatprep.subr.mxu0 %v1424
    %1652 = vmatpush1.msra.mxu0 %v1423
    %1653 = vmatprep.subr.mxu0 %v1422
    %1654 = vmatpush1.msra.mxu0 %v1421
    %1655 = vmatprep.subr.mxu0 %v1420
    %1656 = vmatpush1.msra.mxu0 %v1419
    %1657 = vmatprep.subr.mxu0 %v1418
    %1658 = vmatpush1.msra.mxu0 %v1417
    %1659 = vmatprep.subr.mxu0 %v1480
    %1660 = vmatpush2.msra.mxu0 %v1479
    %1661 = vmatprep.subr.mxu0 %v1478
    %1662 = vmatpush2.msra.mxu0 %v1477
    %1663 = vmatprep.subr.mxu0 %v1476
    %1664 = vmatpush2.msra.mxu0 %v1475
    %1665 = vmatprep.subr.mxu0 %v1474
    %1666 = vmatpush2.msra.mxu0 %v1473
    %1667 = vmatprep.subr.mxu0 %v1472
    %1668 = vmatpush2.msra.mxu0 %v1471
    %1669 = vmatprep.subr.mxu0 %v1470
    %1670 = vmatpush2.msra.mxu0 %v1469
    %1671 = vmatprep.subr.mxu0 %v1468
    %1672 = vmatpush2.msra.mxu0 %v1467
    %1673 = vmatprep.subr.mxu0 %v1466
    %1674 = vmatpush2.msra.mxu0 %v1465
    %1675 = vmatprep.subr.mxu0 %v1464
    %1676 = vmatpush2.msra.mxu0 %v1463
    %1677 = vmatprep.subr.mxu0 %v1462
    %1678 = vmatpush2.msra.mxu0 %v1461
    %1679 = vmatprep.subr.mxu0 %v1460
    %1680 = vmatpush2.msra.mxu0 %v1459
    %1681 = vmatprep.subr.mxu0 %v1458
    %1682 = vmatpush2.msra.mxu0 %v1457
    %1683 = vmatprep.subr.mxu0 %v1456
    %1684 = vmatpush2.msra.mxu0 %v1455
    %1685 = vmatprep.subr.mxu0 %v1454
    %1686 = vmatpush2.msra.mxu0 %v1453
    %1687 = vmatprep.subr.mxu0 %v1452
    %1688 = vmatpush2.msra.mxu0 %v1451
    %1689 = vmatprep.subr.mxu0 %v1450
    %1690 = vmatpush2.msra.mxu0 %v1449
    %1691 = vmatprep.mubr.f32.mxu0 %v504
    %1692 = vmatmul.mubr.f32.gmra.mxu0 %v503
    %v1693 = vpop.f32.mrf.mxu0
    %v1694 = vadd.f32 %v1623, %v1693
    %v1695 = vpop.f32.mrf.mxu0
    %v1696 = vadd.f32 %v1625, %v1695
    %1697 = vdwg.mxu0
    %1698 = vmatprep.subr.mxu0 %v1512
    %1699 = vmatpush1.msra.mxu0 %v1511
    %1700 = vmatprep.subr.mxu0 %v1510
    %1701 = vmatpush1.msra.mxu0 %v1509
    %1702 = vmatprep.subr.mxu0 %v1508
    %1703 = vmatpush1.msra.mxu0 %v1507
    %1704 = vmatprep.subr.mxu0 %v1506
    %1705 = vmatpush1.msra.mxu0 %v1505
    %1706 = vmatprep.subr.mxu0 %v1504
    %1707 = vmatpush1.msra.mxu0 %v1503
    %1708 = vmatprep.subr.mxu0 %v1502
    %1709 = vmatpush1.msra.mxu0 %v1501
    %1710 = vmatprep.subr.mxu0 %v1500
    %1711 = vmatpush1.msra.mxu0 %v1499
    %1712 = vmatprep.subr.mxu0 %v1498
    %1713 = vmatpush1.msra.mxu0 %v1497
    %1714 = vmatprep.subr.mxu0 %v1496
    %1715 = vmatpush1.msra.mxu0 %v1495
    %1716 = vmatprep.subr.mxu0 %v1494
    %1717 = vmatpush1.msra.mxu0 %v1493
    %1718 = vmatprep.subr.mxu0 %v1492
    %1719 = vmatpush1.msra.mxu0 %v1491
    %1720 = vmatprep.subr.mxu0 %v1490
    %1721 = vmatpush1.msra.mxu0 %v1489
    %1722 = vmatprep.subr.mxu0 %v1488
    %1723 = vmatpush1.msra.mxu0 %v1487
    %1724 = vmatprep.subr.mxu0 %v1486
    %1725 = vmatpush1.msra.mxu0 %v1485
    %1726 = vmatprep.subr.mxu0 %v1484
    %1727 = vmatpush1.msra.mxu0 %v1483
    %1728 = vmatprep.subr.mxu0 %v1482
    %1729 = vmatpush1.msra.mxu0 %v1481
    %1730 = vmatprep.subr.mxu0 0.0
    %1731 = vmatpush2.msra.mxu0 0.0
    %1732 = vmatprep.subr.mxu0 0.0
    %1733 = vmatpush2.msra.mxu0 0.0
    %1734 = vmatprep.subr.mxu0 0.0
    %1735 = vmatpush2.msra.mxu0 0.0
    %1736 = vmatprep.subr.mxu0 0.0
    %1737 = vmatpush2.msra.mxu0 0.0
    %1738 = vmatprep.subr.mxu0 %v1554
    %1739 = vmatpush2.msra.mxu0 %v1551
    %1740 = vmatprep.subr.mxu0 %v1534
    %1741 = vmatpush2.msra.mxu0 %v1533
    %1742 = vmatprep.subr.mxu0 %v1532
    %1743 = vmatpush2.msra.mxu0 %v1531
    %1744 = vmatprep.subr.mxu0 %v1530
    %1745 = vmatpush2.msra.mxu0 %v1529
    %1746 = vmatprep.subr.mxu0 %v1528
    %1747 = vmatpush2.msra.mxu0 %v1527
    %1748 = vmatprep.subr.mxu0 %v1526
    %1749 = vmatpush2.msra.mxu0 %v1525
    %1750 = vmatprep.subr.mxu0 %v1524
    %1751 = vmatpush2.msra.mxu0 %v1523
    %1752 = vmatprep.subr.mxu0 %v1522
    %1753 = vmatpush2.msra.mxu0 %v1521
    %1754 = vmatprep.subr.mxu0 %v1520
    %1755 = vmatpush2.msra.mxu0 %v1519
    %1756 = vmatprep.subr.mxu0 %v1518
    %1757 = vmatpush2.msra.mxu0 %v1517
    %1758 = vmatprep.subr.mxu0 %v1516
    %1759 = vmatpush2.msra.mxu0 %v1515
    %1760 = vmatprep.subr.mxu0 %v1514
    %1761 = vmatpush2.msra.mxu0 %v1513
    %1762 = vmatprep.mubr.f32.mxu0 %v705
    %1763 = vmatmul.mubr.f32.gmra.mxu0 %v505
    %v1764 = vpop.f32.mrf.mxu0
    %v1765 = vadd.f32 %v1694, %v1764
    %v1766 = vpop.f32.mrf.mxu0
    %v1767 = vadd.f32 %v1696, %v1766
    %1768 = vdwg.mxu0
    %v1769 = vmax.f32 %v1765, 0.0
    %v1770 = vmax.f32 %v1767, 0.0
    %v1771 = vadd.f32 %v1350, %v1769
    %v1772 = vadd.f32 %v1351, %v1770
    %v1775 = vcombine.low %v1771, %v1772
    %v1777 = vunpack.c.l.s4 1983009808
    %v1778 = vunpack.c.0.s8 %v1777
    %v1779 = vlaneseq
    %v1780 = vshrl.u32 %v1779, 7
    %v1781 = vsub.s32 %v1778, %v1780
    %v1782 = vrot.slane %v1775, %v1781
    %vm1784 = vcmask 1041408
    %vm1785 = vcmask 953346
    %vm1786 = vmor %vm1785, %vm1784
    %1787 = vst.msk [vmem:[%s5] sm:$0xf] %vm1786, %v1782
    // Predicated region
    $region38: #{mrc_forward.1} parent=1 // pred_check
      _
    $region39: #{mrc_forward.1} parent=1 // pred_check_branch
      %1789 = sbr.rel (0) target = $region41
    $region40: #{mrc_forward.1} parent=1 // pred_region
      _
    $region41: #{mrc_forward.1} parent=1 // pred_fallthru
      _
    // Predicated region
    $region42: #{mrc_forward.1} parent=1 // pred_check
      _
    $region43: #{mrc_forward.1} parent=1 // pred_check_branch
      %1791 = sbr.rel (0) target = $region45
    $region44: #{mrc_forward.1} parent=1 // pred_region
      _
    $region45: #{mrc_forward.1} parent=1 // pred_fallthru
      _
    %1792 = vsyncpa [#allocation3], 1
    %1793 = vsyncpa [#allocation5], 1
    %1794 = vsyncpa [#allocation8], 1

</llo_original>
